<compile_context>
chip_gen: v6e
topology: v6e:2x2x1
jax: 0.10.0
libtpu: 0.0.40
codegen_flags: <defaults>
</compile_context>

<pallas_src>
import functools

import jax
import jax.numpy as jnp
from jax import lax
from jax.experimental import pallas as pl
from jax.experimental.pallas import tpu as pltpu

_VMEM_LIMIT = 32 * 1024 * 1024  # safe scoped-VMEM budget on v5e/v6e/v7x


def _round_up(x, m):
    return -(-x // m) * m


def _largest_divisor_leq(n, cap):
    cap = max(1, min(n, cap))
    for d in range(cap, 0, -1):
        if n % d == 0:
            return d
    return 1


# ----------------------------------------------------------------------------
# 1. fused conv1 + BN(eval) + ReLU + MaxPool2d(3,2,1)    (single im2col matmul)
# ----------------------------------------------------------------------------
def _stem_kernel(x_ref, w_ref, o_ref, y_scr, *, TPo, RC, Wq8, W_pool):
    """One (batch, pool-row-slab) grid step.

    x_ref : (1, Hq*Wq8, Kpad)  im2col rows (conv positions incl. pool pads)
    w_ref : (Kpad, Cpad)       BN-scaled conv weights + bias row, lane padded
    o_ref : (1, TPo, W_pool, Cpad)  pooled output slab
    y_scr : (RC*Wq8, Cpad)     VMEM scratch holding the conv+ReLU slab
    """
    r = pl.program_id(1)
    row0 = pl.multiple_of(r * (2 * TPo * Wq8), 2 * TPo * Wq8)

    # Single im2col matmul: (RC*Wq8, Kpad) x (Kpad, Cpad).  All-zero (pad) rows
    # give exactly 0 after the ReLU because the BN bias is an im2col feature.
    lhs = x_ref[0, pl.ds(row0, RC * Wq8), :]
    y = jnp.dot(lhs, w_ref[...], preferred_element_type=jnp.float32)
    y_scr[...] = jnp.maximum(y, 0.0)

    # 3x3 / stride-2 max pool over the slab: stride-2 sublane reads from VMEM.
    for i in range(TPo):
        acc = None
        for kr in range(3):
            base = (2 * i + kr) * Wq8
            for kc in range(3):
                tap = y_scr[pl.ds(base + kc, W_pool, 2), :]
                acc = tap if acc is None else jnp.maximum(acc, tap)
        o_ref[0, i] = acc.astype(o_ref.dtype)


def stem_forward(x_nhwc, w_oihw, gamma, beta, mean, var, *, stride=2, padding=3,
                 eps=1e-5, compute_dtype=jnp.float32):
    """conv1 (KxK/stride/pad, bias=False) + BN(eval) + ReLU + MaxPool(3,2,1).

    Returns (pooled NHWC features, Cout).  The channel dim is zero-padded to a
    multiple of 128 so every store is lane-dense; pad channels stay exactly 0.
    NOTE: compute_dtype=jnp.bfloat16 halves HBM traffic on v6e/v7x (f32 accum
    is kept via preferred_element_type); f32 is used here for the tight check.
    """
    N, H, W, Cin = x_nhwc.shape
    Cout, Cin_w, K, K2 = w_oihw.shape
    assert Cin == Cin_w and K == K2

    H_conv = (H + 2 * padding - K) // stride + 1
    W_conv = (W + 2 * padding - K) // stride + 1
    H_pool = (H_conv - 1) // 2 + 1            # MaxPool2d(3, stride=2, padding=1)
    W_pool = (W_conv - 1) // 2 + 1
    Hq = 2 * H_pool + 1                       # padded conv rows -1 .. 2*H_pool-1
    Wq = 2 * W_pool + 1
    Wq8 = _round_up(Wq, 8)                    # keep flattened rows sublane-aligned
    Kfeat = K * K * Cin + 1                   # +1: constant-one feature = BN bias
    Kpad = _round_up(Kfeat, 128)              # 148 -> 256: full MXU contraction
    Cpad = _round_up(Cout, 128)

    # ---- wrapper-side im2col (contraction axis last -> lane-dense LHS) ----
    xp = jnp.pad(x_nhwc, ((0, 0), (padding, padding), (padding, padding), (0, 0)))
    taps = []
    for kh in range(K):
        for kw in range(K):
            taps.append(lax.slice(
                xp, (0, kh, kw, 0),
                (N, kh + stride * (H_conv - 1) + 1,
                 kw + stride * (W_conv - 1) + 1, Cin),
                (1, stride, stride, 1)))
    taps.append(jnp.ones((N, H_conv, W_conv, 1), xp.dtype))
    col = jnp.concatenate(taps, axis=-1)                       # (N, Hc, Wc, Kfeat)
    col = jnp.pad(col, ((0, 0),
                        (1, Hq - 1 - H_conv),                  # pool pad rows (zeros)
                        (1, Wq8 - 1 - W_conv),                 # pool pad cols (zeros)
                        (0, Kpad - Kfeat)))
    col = col.reshape(N, Hq * Wq8, Kpad).astype(compute_dtype)

    # ---- fold BN(eval) into weights; BN bias becomes an extra contraction row ----
    scale = gamma * lax.rsqrt(var + eps)
    bias = beta - mean * scale
    w = jnp.transpose(w_oihw, (2, 3, 1, 0)).reshape(K * K * Cin, Cout) * scale[None, :]
    w = jnp.concatenate([w, bias[None, :]], axis=0)            # (Kfeat, Cout)
    w = jnp.pad(w, ((0, Kpad - Kfeat), (0, Cpad - Cout))).astype(compute_dtype)

    # ---- pool-row slab size: largest divisor of H_pool (no degenerate tail),
    #      keep >=2 slabs when possible so both grid axes are parallel (v7x) ----
    TPo = _largest_divisor_leq(H_pool, 8)
    if H_pool // TPo < 2 and H_pool >= 2:
        TPo = _largest_divisor_leq(H_pool, H_pool // 2)
    RC = 2 * TPo + 1                          # conv rows (incl. halo) per slab

    kernel = functools.partial(_stem_kernel, TPo=TPo, RC=RC, Wq8=Wq8, W_pool=W_pool)
    out = pl.pallas_call(
        kernel,
        out_shape=jax.ShapeDtypeStruct((N, H_pool, W_pool, Cpad), jnp.float32),
        grid_spec=pltpu.PrefetchScalarGridSpec(
            num_scalar_prefetch=0,
            grid=(N, H_pool // TPo),
            in_specs=[
                pl.BlockSpec((1, Hq * Wq8, Kpad), lambda n, r: (n, 0, 0)),  # per-n resident
                pl.BlockSpec((Kpad, Cpad), lambda n, r: (0, 0)),            # VMEM resident
            ],
            out_specs=pl.BlockSpec((1, TPo, W_pool, Cpad), lambda n, r: (n, r, 0, 0)),
            scratch_shapes=[pltpu.VMEM((RC * Wq8, Cpad), jnp.float32)],
        ),
        compiler_params=pltpu.CompilerParams(
            dimension_semantics=("parallel", "parallel"),
            vmem_limit_bytes=_VMEM_LIMIT),
    )(col, w)
    return out, Cout


# ----------------------------------------------------------------------------
# 2. partpool (4,1) + avgpool (1,1) + classifier LinearBlock, fused (BN folded)
# ----------------------------------------------------------------------------
def _head_kernel(y_ref, w1_ref, b1_ref, w2_ref, b2_ref, part_ref, logit_ref, *,
                 parts, bin_h):
    _, Hp, Wp, C = y_ref.shape
    y = y_ref[0].reshape(parts, bin_h, Wp, C)            # free split of untiled H
    pm = jnp.max(jnp.max(y, axis=2), axis=1)             # (parts, C)  partpool
    part_ref[0] = pm.astype(part_ref.dtype)              # single store
    glob = jnp.max(pm, axis=0, keepdims=True)            # (1, C)      global max
    h = jnp.maximum(jnp.dot(glob, w1_ref[...],
                            preferred_element_type=jnp.float32) + b1_ref[...], 0.0)
    o = jnp.maximum(jnp.dot(h, w2_ref[...],
                            preferred_element_type=jnp.float32) + b2_ref[...], 0.0)
    logit_ref[0] = o.astype(logit_ref.dtype)


def head_forward(y_pooled, *, parts, fc1_w, fc1_b, bn1, fc2_w, fc2_b, bn2, eps=1e-5):
    """Returns (part features (N, parts, Cpad), logits (N, 1, Dpad))."""
    N, Hp, Wp, Cpad = y_pooled.shape
    assert Hp % parts == 0, "AdaptiveMaxPool2d((4,1)) needs H divisible by parts here"
    Dh = fc1_w.shape[0]
    Dpad = _round_up(Dh, 128)                 # lane-dense classifier stores

    def fold(w_oi, b_o, bn, in_pad, out_pad):
        g, be, m, v = bn
        s = g * lax.rsqrt(v + eps)
        Wf = w_oi.T * s[None, :]
        Bf = (b_o - m) * s + be
        Wf = jnp.pad(Wf, ((0, in_pad - Wf.shape[0]), (0, out_pad - Wf.shape[1])))
        Bf = jnp.pad(Bf, (0, out_pad - Bf.shape[0])).reshape(1, out_pad)
        return Wf.astype(jnp.float32), Bf.astype(jnp.float32)

    W1, B1 = fold(fc1_w, fc1_b, bn1, Cpad, Dpad)
    W2, B2 = fold(fc2_w, fc2_b, bn2, Dpad, Dpad)

    kernel = functools.partial(_head_kernel, parts=parts, bin_h=Hp // parts)
    part, logits = pl.pallas_call(
        kernel,
        out_shape=(jax.ShapeDtypeStruct((N, parts, Cpad), jnp.float32),
                   jax.ShapeDtypeStruct((N, 1, Dpad), jnp.float32)),
        grid_spec=pltpu.PrefetchScalarGridSpec(
            num_scalar_prefetch=0, grid=(N,),
            in_specs=[
                pl.BlockSpec((1, Hp, Wp, Cpad), lambda n: (n, 0, 0, 0)),
                pl.BlockSpec((Cpad, Dpad), lambda n: (0, 0)),
                pl.BlockSpec((1, Dpad), lambda n: (0, 0)),
                pl.BlockSpec((Dpad, Dpad), lambda n: (0, 0)),
                pl.BlockSpec((1, Dpad), lambda n: (0, 0)),
            ],
            out_specs=[pl.BlockSpec((1, parts, Cpad), lambda n: (n, 0, 0)),
                       pl.BlockSpec((1, 1, Dpad), lambda n: (n, 0, 0))],
        ),
        compiler_params=pltpu.CompilerParams(
            dimension_semantics=("parallel",), vmem_limit_bytes=_VMEM_LIMIT),
    )(y_pooled, W1, B1, W2, B2)
    return part, logits


# ----------------------------------------------------------------------------
# full ReID forward
# ----------------------------------------------------------------------------
def reid_forward(x_nchw, params, *, part=4):
    """ReID.forward -> (f, x) like the PyTorch module (inference-mode BN)."""
    N = x_nchw.shape[0]
    x = jnp.transpose(x_nchw, (0, 2, 3, 1))            # single NCHW->NHWC transpose

    g, be, m, v = params["bn1"]
    y, c_feat = stem_forward(x, params["conv1_w"], g, be, m, v, stride=2, padding=3)

    # TODO(synk): model.layer1..layer4 (pretrained torchvision ResNet-50 bottleneck
    # stacks incl. the stride-(1,1) surgery on layer4) are omitted -- pretrained
    # weights cannot be built in-script; the head runs on the stem features.

    partp, logits_pad = head_forward(
        y, parts=part,
        fc1_w=params["fc1_w"], fc1_b=params["fc1_b"], bn1=params["cls_bn1"],
        fc2_w=params["fc2_w"], fc2_b=params["fc2_b"], bn2=params["cls_bn2"])

    class_num = params["fc1_w"].shape[0]
    partp = partp[:, :, :c_feat]                       # drop lane-pad channels
    # f = partpool(x).view(N, C*part): channel-major flatten as in torch .view
    f = jnp.transpose(partp, (0, 2, 1)).reshape(N, c_feat * part)
    logits = logits_pad[:, 0, :class_num]
    return f, logits


# ----------------------------------------------------------------------------
# pure-JAX reference
# ----------------------------------------------------------------------------
def _reference_reid(x_nchw, params, *, part=4, eps=1e-5):
    g, be, m, v = params["bn1"]
    y = lax.conv_general_dilated(
        x_nchw, params["conv1_w"], window_strides=(2, 2),
        padding=((3, 3), (3, 3)), dimension_numbers=("NCHW", "OIHW", "NCHW"),
        precision=lax.Precision.HIGHEST)
    s = g / jnp.sqrt(v + eps)
    y = y * s[None, :, None, None] + (be - m * s)[None, :, None, None]
    y = jnp.maximum(y, 0.0)
    y = lax.reduce_window(y, -jnp.inf, lax.max, (1, 1, 3, 3), (1, 1, 2, 2),
                          ((0, 0), (0, 0), (1, 1), (1, 1)))
    N, C, H, W = y.shape
    partv = jnp.max(y.reshape(N, C, part, H // part, W), axis=(3, 4))   # (N, C, part)
    f = partv.reshape(N, C * part)
    gl = jnp.max(y, axis=(2, 3))                                        # (N, C)

    def bn1d(z, bn):
        gg, bb, mm, vv = bn
        return (z - mm) / jnp.sqrt(vv + eps) * gg + bb

    h = jnp.dot(gl, params["fc1_w"].T, precision=lax.Precision.HIGHEST) + params["fc1_b"]
    h = jnp.maximum(bn1d(h, params["cls_bn1"]), 0.0)
    o = jnp.dot(h, params["fc2_w"].T, precision=lax.Precision.HIGHEST) + params["fc2_b"]
    o = jnp.maximum(bn1d(o, params["cls_bn2"]), 0.0)
    return f, o


if __name__ == "__main__":
    N, Cin, H, W = 2, 3, 32, 32
    stem_cout = 64          # conv1 output channels (as in ResNet-50)
    class_num = 8
    part = 4                # AdaptiveMaxPool2d((4, 1))

    key = jax.random.PRNGKey(0)
    ks = jax.random.split(key, 18)

    x = jax.random.normal(ks[0], (N, Cin, H, W), jnp.float32)

    def bn_params(kg, kb, km, kv, c):
        return (1.0 + 0.1 * jax.random.normal(kg, (c,), jnp.float32),
                0.1 * jax.random.normal(kb, (c,), jnp.float32),
                0.1 * jax.random.normal(km, (c,), jnp.float32),
                0.5 + jax.random.uniform(kv, (c,), jnp.float32))

    conv1_w = ((2.0 / (Cin * 49)) ** 0.5) * jax.random.normal(
        ks[1], (stem_cout, Cin, 7, 7), jnp.float32)

    c_feat = stem_cout      # would be 2048 with the full (TODO) backbone
    fc1_w = ((1.0 / c_feat) ** 0.5) * jax.random.normal(
        ks[2], (class_num, c_feat), jnp.float32)
    fc1_b = 0.1 * jax.random.normal(ks[3], (class_num,), jnp.float32)
    fc2_w = ((1.0 / class_num) ** 0.5) * jax.random.normal(
        ks[4], (class_num, class_num), jnp.float32)
    fc2_b = 0.1 * jax.random.normal(ks[5], (class_num,), jnp.float32)

    params = {
        "conv1_w": conv1_w,
        "bn1": bn_params(ks[6], ks[7], ks[8], ks[9], stem_cout),
        "fc1_w": fc1_w, "fc1_b": fc1_b,
        "cls_bn1": bn_params(ks[10], ks[11], ks[12], ks[13], class_num),
        "fc2_w": fc2_w, "fc2_b": fc2_b,
        "cls_bn2": bn_params(ks[14], ks[15], ks[16], ks[17], class_num),
    }

    fwd = jax.jit(functools.partial(reid_forward, part=part))
    f, logits = jax.block_until_ready(fwd(x, params))

    f_ref, logits_ref = _reference_reid(x, params, part=part)

    assert f.shape == (N, c_feat * part), f.shape
    assert logits.shape == (N, class_num), logits.shape
    assert jnp.allclose(f, f_ref, atol=5e-3, rtol=5e-3), \
        float(jnp.max(jnp.abs(f - f_ref)))
    assert jnp.allclose(logits, logits_ref, atol=5e-3, rtol=5e-3), \
        float(jnp.max(jnp.abs(logits - logits_ref)))

    print("KERNEL_OK")
</pallas_src>

<mosaic_0001>
module attributes {stable_mosaic.version = 11 : i64} {
  func.func @_stem_kernel(%arg0: i32, %arg1: i32, %arg2: memref<1x408x256xf32, #tpu.memory_space<vmem>>, %arg3: memref<256x128xf32, #tpu.memory_space<vmem>>, %arg4: memref<1x4x8x128xf32, #tpu.memory_space<vmem>>, %arg5: memref<216x128xf32, #tpu.memory_space<vmem>>) attributes {dimension_semantics = [#tpu.dimension_semantics<parallel>, #tpu.dimension_semantics<parallel>], iteration_bounds = array<i64: 2, 2>, scalar_prefetch = 0 : i64, scratch_operands = 1 : i64, tpu.core_type = #tpu.core_type<tc>, window_params = [{transform_indices = @transform_0, window_bounds = array<i64: 1, 408, 256>}, {pipeline_mode = #tpu.pipeline_mode<synchronous>, transform_indices = @transform_1, window_bounds = array<i64: 256, 128>}, {transform_indices = @transform_2, window_bounds = array<i64: 1, 4, 8, 128>}]} {
    %c192_i32 = arith.constant 192 : i32
    %0 = arith.muli %arg1, %c192_i32 : i32
    %1 = tpu.assume_multiple %0, 192 : i32
    %c0 = arith.constant 0 : index
    %2 = arith.index_cast %1 : i32 to index
    %c0_0 = arith.constant 0 : index
    %3 = vector.load %arg2[%c0, %2, %c0_0] : memref<1x408x256xf32, #tpu.memory_space<vmem>>, vector<1x216x256xf32>
    %4 = vector.shape_cast %3 : vector<1x216x256xf32> to vector<216x256xf32>
    %c0_1 = arith.constant 0 : index
    %c0_2 = arith.constant 0 : index
    %5 = vector.load %arg3[%c0_1, %c0_2] : memref<256x128xf32, #tpu.memory_space<vmem>>, vector<256x128xf32>
    %cst = arith.constant dense<0.000000e+00> : vector<216x128xf32>
    %6 = tpu.matmul %4, %5, %cst {dimension_numbers = #tpu.dot_dimension_numbers<[1], [0], [0], [1], [0, 0, 1, 1], [], []>} : vector<216x256xf32>, vector<256x128xf32>, vector<216x128xf32> -> vector<216x128xf32>
    %cst_3 = arith.constant 0.000000e+00 : f32
    %7 = vector.broadcast %cst_3 : f32 to vector<216x128xf32>
    %8 = arith.maximumf %6, %7 : vector<216x128xf32>
    %c0_4 = arith.constant 0 : index
    %c0_5 = arith.constant 0 : index
    %9 = vector.load %arg5[%c0_4, %c0_5] : memref<216x128xf32, #tpu.memory_space<vmem>>, vector<216x128xf32>
    tpu.vector_store %arg5[%c0_4, %c0_5], %8 {strides = array<i32>} : memref<216x128xf32, #tpu.memory_space<vmem>>, vector<216x128xf32>,
    %c0_6 = arith.constant 0 : index
    %c0_7 = arith.constant 0 : index
    %10 = tpu.strided_load %arg5[%c0_6, %c0_7] {strides = array<i32: 2, 1>} : memref<216x128xf32, #tpu.memory_space<vmem>>, vector<8x128xf32>
    %c1 = arith.constant 1 : index
    %c0_8 = arith.constant 0 : index
    %11 = tpu.strided_load %arg5[%c1, %c0_8] {strides = array<i32: 2, 1>} : memref<216x128xf32, #tpu.memory_space<vmem>>, vector<8x128xf32>
    %12 = arith.maximumf %10, %11 : vector<8x128xf32>
    %c2 = arith.constant 2 : index
    %c0_9 = arith.constant 0 : index
    %13 = tpu.strided_load %arg5[%c2, %c0_9] {strides = array<i32: 2, 1>} : memref<216x128xf32, #tpu.memory_space<vmem>>, vector<8x128xf32>
    %14 = arith.maximumf %12, %13 : vector<8x128xf32>
    %c24 = arith.constant 24 : index
    %c0_10 = arith.constant 0 : index
    %15 = tpu.strided_load %arg5[%c24, %c0_10] {strides = array<i32: 2, 1>} : memref<216x128xf32, #tpu.memory_space<vmem>>, vector<8x128xf32>
    %16 = arith.maximumf %14, %15 : vector<8x128xf32>
    %c25 = arith.constant 25 : index
    %c0_11 = arith.constant 0 : index
    %17 = tpu.strided_load %arg5[%c25, %c0_11] {strides = array<i32: 2, 1>} : memref<216x128xf32, #tpu.memory_space<vmem>>, vector<8x128xf32>
    %18 = arith.maximumf %16, %17 : vector<8x128xf32>
    %c26 = arith.constant 26 : index
    %c0_12 = arith.constant 0 : index
    %19 = tpu.strided_load %arg5[%c26, %c0_12] {strides = array<i32: 2, 1>} : memref<216x128xf32, #tpu.memory_space<vmem>>, vector<8x128xf32>
    %20 = arith.maximumf %18, %19 : vector<8x128xf32>
    %c48 = arith.constant 48 : index
    %c0_13 = arith.constant 0 : index
    %21 = tpu.strided_load %arg5[%c48, %c0_13] {strides = array<i32: 2, 1>} : memref<216x128xf32, #tpu.memory_space<vmem>>, vector<8x128xf32>
    %22 = arith.maximumf %20, %21 : vector<8x128xf32>
    %c49 = arith.constant 49 : index
    %c0_14 = arith.constant 0 : index
    %23 = tpu.strided_load %arg5[%c49, %c0_14] {strides = array<i32: 2, 1>} : memref<216x128xf32, #tpu.memory_space<vmem>>, vector<8x128xf32>
    %24 = arith.maximumf %22, %23 : vector<8x128xf32>
    %c50 = arith.constant 50 : index
    %c0_15 = arith.constant 0 : index
    %25 = tpu.strided_load %arg5[%c50, %c0_15] {strides = array<i32: 2, 1>} : memref<216x128xf32, #tpu.memory_space<vmem>>, vector<8x128xf32>
    %26 = arith.maximumf %24, %25 : vector<8x128xf32>
    %c0_16 = arith.constant 0 : index
    %c0_17 = arith.constant 0 : index
    %c0_18 = arith.constant 0 : index
    %c0_19 = arith.constant 0 : index
    %27 = vector.load %arg4[%c0_16, %c0_17, %c0_18, %c0_19] : memref<1x4x8x128xf32, #tpu.memory_space<vmem>>, vector<1x1x8x128xf32>
    %28 = vector.shape_cast %27 : vector<1x1x8x128xf32> to vector<8x128xf32>
    %29 = vector.shape_cast %26 : vector<8x128xf32> to vector<1x1x8x128xf32>
    tpu.vector_store %arg4[%c0_16, %c0_17, %c0_18, %c0_19], %29 {strides = array<i32>} : memref<1x4x8x128xf32, #tpu.memory_space<vmem>>, vector<1x1x8x128xf32>,
    %c48_20 = arith.constant 48 : index
    %c0_21 = arith.constant 0 : index
    %30 = tpu.strided_load %arg5[%c48_20, %c0_21] {strides = array<i32: 2, 1>} : memref<216x128xf32, #tpu.memory_space<vmem>>, vector<8x128xf32>
    %c49_22 = arith.constant 49 : index
    %c0_23 = arith.constant 0 : index
    %31 = tpu.strided_load %arg5[%c49_22, %c0_23] {strides = array<i32: 2, 1>} : memref<216x128xf32, #tpu.memory_space<vmem>>, vector<8x128xf32>
    %32 = arith.maximumf %30, %31 : vector<8x128xf32>
    %c50_24 = arith.constant 50 : index
    %c0_25 = arith.constant 0 : index
    %33 = tpu.strided_load %arg5[%c50_24, %c0_25] {strides = array<i32: 2, 1>} : memref<216x128xf32, #tpu.memory_space<vmem>>, vector<8x128xf32>
    %34 = arith.maximumf %32, %33 : vector<8x128xf32>
    %c72 = arith.constant 72 : index
    %c0_26 = arith.constant 0 : index
    %35 = tpu.strided_load %arg5[%c72, %c0_26] {strides = array<i32: 2, 1>} : memref<216x128xf32, #tpu.memory_space<vmem>>, vector<8x128xf32>
    %36 = arith.maximumf %34, %35 : vector<8x128xf32>
    %c73 = arith.constant 73 : index
    %c0_27 = arith.constant 0 : index
    %37 = tpu.strided_load %arg5[%c73, %c0_27] {strides = array<i32: 2, 1>} : memref<216x128xf32, #tpu.memory_space<vmem>>, vector<8x128xf32>
    %38 = arith.maximumf %36, %37 : vector<8x128xf32>
    %c74 = arith.constant 74 : index
    %c0_28 = arith.constant 0 : index
    %39 = tpu.strided_load %arg5[%c74, %c0_28] {strides = array<i32: 2, 1>} : memref<216x128xf32, #tpu.memory_space<vmem>>, vector<8x128xf32>
    %40 = arith.maximumf %38, %39 : vector<8x128xf32>
    %c96 = arith.constant 96 : index
    %c0_29 = arith.constant 0 : index
    %41 = tpu.strided_load %arg5[%c96, %c0_29] {strides = array<i32: 2, 1>} : memref<216x128xf32, #tpu.memory_space<vmem>>, vector<8x128xf32>
    %42 = arith.maximumf %40, %41 : vector<8x128xf32>
    %c97 = arith.constant 97 : index
    %c0_30 = arith.constant 0 : index
    %43 = tpu.strided_load %arg5[%c97, %c0_30] {strides = array<i32: 2, 1>} : memref<216x128xf32, #tpu.memory_space<vmem>>, vector<8x128xf32>
    %44 = arith.maximumf %42, %43 : vector<8x128xf32>
    %c98 = arith.constant 98 : index
    %c0_31 = arith.constant 0 : index
    %45 = tpu.strided_load %arg5[%c98, %c0_31] {strides = array<i32: 2, 1>} : memref<216x128xf32, #tpu.memory_space<vmem>>, vector<8x128xf32>
    %46 = arith.maximumf %44, %45 : vector<8x128xf32>
    %c0_32 = arith.constant 0 : index
    %c1_33 = arith.constant 1 : index
    %c0_34 = arith.constant 0 : index
    %c0_35 = arith.constant 0 : index
    %47 = vector.load %arg4[%c0_32, %c1_33, %c0_34, %c0_35] : memref<1x4x8x128xf32, #tpu.memory_space<vmem>>, vector<1x1x8x128xf32>
    %48 = vector.shape_cast %47 : vector<1x1x8x128xf32> to vector<8x128xf32>
    %49 = vector.shape_cast %46 : vector<8x128xf32> to vector<1x1x8x128xf32>
    tpu.vector_store %arg4[%c0_32, %c1_33, %c0_34, %c0_35], %49 {strides = array<i32>} : memref<1x4x8x128xf32, #tpu.memory_space<vmem>>, vector<1x1x8x128xf32>,
    %c96_36 = arith.constant 96 : index
    %c0_37 = arith.constant 0 : index
    %50 = tpu.strided_load %arg5[%c96_36, %c0_37] {strides = array<i32: 2, 1>} : memref<216x128xf32, #tpu.memory_space<vmem>>, vector<8x128xf32>
    %c97_38 = arith.constant 97 : index
    %c0_39 = arith.constant 0 : index
    %51 = tpu.strided_load %arg5[%c97_38, %c0_39] {strides = array<i32: 2, 1>} : memref<216x128xf32, #tpu.memory_space<vmem>>, vector<8x128xf32>
    %52 = arith.maximumf %50, %51 : vector<8x128xf32>
    %c98_40 = arith.constant 98 : index
    %c0_41 = arith.constant 0 : index
    %53 = tpu.strided_load %arg5[%c98_40, %c0_41] {strides = array<i32: 2, 1>} : memref<216x128xf32, #tpu.memory_space<vmem>>, vector<8x128xf32>
    %54 = arith.maximumf %52, %53 : vector<8x128xf32>
    %c120 = arith.constant 120 : index
    %c0_42 = arith.constant 0 : index
    %55 = tpu.strided_load %arg5[%c120, %c0_42] {strides = array<i32: 2, 1>} : memref<216x128xf32, #tpu.memory_space<vmem>>, vector<8x128xf32>
    %56 = arith.maximumf %54, %55 : vector<8x128xf32>
    %c121 = arith.constant 121 : index
    %c0_43 = arith.constant 0 : index
    %57 = tpu.strided_load %arg5[%c121, %c0_43] {strides = array<i32: 2, 1>} : memref<216x128xf32, #tpu.memory_space<vmem>>, vector<8x128xf32>
    %58 = arith.maximumf %56, %57 : vector<8x128xf32>
    %c122 = arith.constant 122 : index
    %c0_44 = arith.constant 0 : index
    %59 = tpu.strided_load %arg5[%c122, %c0_44] {strides = array<i32: 2, 1>} : memref<216x128xf32, #tpu.memory_space<vmem>>, vector<8x128xf32>
    %60 = arith.maximumf %58, %59 : vector<8x128xf32>
    %c144 = arith.constant 144 : index
    %c0_45 = arith.constant 0 : index
    %61 = tpu.strided_load %arg5[%c144, %c0_45] {strides = array<i32: 2, 1>} : memref<216x128xf32, #tpu.memory_space<vmem>>, vector<8x128xf32>
    %62 = arith.maximumf %60, %61 : vector<8x128xf32>
    %c145 = arith.constant 145 : index
    %c0_46 = arith.constant 0 : index
    %63 = tpu.strided_load %arg5[%c145, %c0_46] {strides = array<i32: 2, 1>} : memref<216x128xf32, #tpu.memory_space<vmem>>, vector<8x128xf32>
    %64 = arith.maximumf %62, %63 : vector<8x128xf32>
    %c146 = arith.constant 146 : index
    %c0_47 = arith.constant 0 : index
    %65 = tpu.strided_load %arg5[%c146, %c0_47] {strides = array<i32: 2, 1>} : memref<216x128xf32, #tpu.memory_space<vmem>>, vector<8x128xf32>
    %66 = arith.maximumf %64, %65 : vector<8x128xf32>
    %c0_48 = arith.constant 0 : index
    %c2_49 = arith.constant 2 : index
    %c0_50 = arith.constant 0 : index
    %c0_51 = arith.constant 0 : index
    %67 = vector.load %arg4[%c0_48, %c2_49, %c0_50, %c0_51] : memref<1x4x8x128xf32, #tpu.memory_space<vmem>>, vector<1x1x8x128xf32>
    %68 = vector.shape_cast %67 : vector<1x1x8x128xf32> to vector<8x128xf32>
    %69 = vector.shape_cast %66 : vector<8x128xf32> to vector<1x1x8x128xf32>
    tpu.vector_store %arg4[%c0_48, %c2_49, %c0_50, %c0_51], %69 {strides = array<i32>} : memref<1x4x8x128xf32, #tpu.memory_space<vmem>>, vector<1x1x8x128xf32>,
    %c144_52 = arith.constant 144 : index
    %c0_53 = arith.constant 0 : index
    %70 = tpu.strided_load %arg5[%c144_52, %c0_53] {strides = array<i32: 2, 1>} : memref<216x128xf32, #tpu.memory_space<vmem>>, vector<8x128xf32>
    %c145_54 = arith.constant 145 : index
    %c0_55 = arith.constant 0 : index
    %71 = tpu.strided_load %arg5[%c145_54, %c0_55] {strides = array<i32: 2, 1>} : memref<216x128xf32, #tpu.memory_space<vmem>>, vector<8x128xf32>
    %72 = arith.maximumf %70, %71 : vector<8x128xf32>
    %c146_56 = arith.constant 146 : index
    %c0_57 = arith.constant 0 : index
    %73 = tpu.strided_load %arg5[%c146_56, %c0_57] {strides = array<i32: 2, 1>} : memref<216x128xf32, #tpu.memory_space<vmem>>, vector<8x128xf32>
    %74 = arith.maximumf %72, %73 : vector<8x128xf32>
    %c168 = arith.constant 168 : index
    %c0_58 = arith.constant 0 : index
    %75 = tpu.strided_load %arg5[%c168, %c0_58] {strides = array<i32: 2, 1>} : memref<216x128xf32, #tpu.memory_space<vmem>>, vector<8x128xf32>
    %76 = arith.maximumf %74, %75 : vector<8x128xf32>
    %c169 = arith.constant 169 : index
    %c0_59 = arith.constant 0 : index
    %77 = tpu.strided_load %arg5[%c169, %c0_59] {strides = array<i32: 2, 1>} : memref<216x128xf32, #tpu.memory_space<vmem>>, vector<8x128xf32>
    %78 = arith.maximumf %76, %77 : vector<8x128xf32>
    %c170 = arith.constant 170 : index
    %c0_60 = arith.constant 0 : index
    %79 = tpu.strided_load %arg5[%c170, %c0_60] {strides = array<i32: 2, 1>} : memref<216x128xf32, #tpu.memory_space<vmem>>, vector<8x128xf32>
    %80 = arith.maximumf %78, %79 : vector<8x128xf32>
    %c192 = arith.constant 192 : index
    %c0_61 = arith.constant 0 : index
    %81 = tpu.strided_load %arg5[%c192, %c0_61] {strides = array<i32: 2, 1>} : memref<216x128xf32, #tpu.memory_space<vmem>>, vector<8x128xf32>
    %82 = arith.maximumf %80, %81 : vector<8x128xf32>
    %c193 = arith.constant 193 : index
    %c0_62 = arith.constant 0 : index
    %83 = tpu.strided_load %arg5[%c193, %c0_62] {strides = array<i32: 2, 1>} : memref<216x128xf32, #tpu.memory_space<vmem>>, vector<8x128xf32>
    %84 = arith.maximumf %82, %83 : vector<8x128xf32>
    %c194 = arith.constant 194 : index
    %c0_63 = arith.constant 0 : index
    %85 = tpu.strided_load %arg5[%c194, %c0_63] {strides = array<i32: 2, 1>} : memref<216x128xf32, #tpu.memory_space<vmem>>, vector<8x128xf32>
    %86 = arith.maximumf %84, %85 : vector<8x128xf32>
    %c0_64 = arith.constant 0 : index
    %c3 = arith.constant 3 : index
    %c0_65 = arith.constant 0 : index
    %c0_66 = arith.constant 0 : index
    %87 = vector.load %arg4[%c0_64, %c3, %c0_65, %c0_66] : memref<1x4x8x128xf32, #tpu.memory_space<vmem>>, vector<1x1x8x128xf32>
    %88 = vector.shape_cast %87 : vector<1x1x8x128xf32> to vector<8x128xf32>
    %89 = vector.shape_cast %86 : vector<8x128xf32> to vector<1x1x8x128xf32>
    tpu.vector_store %arg4[%c0_64, %c3, %c0_65, %c0_66], %89 {strides = array<i32>} : memref<1x4x8x128xf32, #tpu.memory_space<vmem>>, vector<1x1x8x128xf32>,
    return
  }
  func.func @transform_0(%arg0: i32, %arg1: i32) -> (i32, i32, i32) {
    %c0_i32 = arith.constant 0 : i32
    %c0_i32_0 = arith.constant 0 : i32
    %c0_i32_1 = arith.constant 0 : i32
    return %arg0, %c0_i32, %c0_i32_0 : i32, i32, i32
  }
  func.func @transform_1(%arg0: i32, %arg1: i32) -> (i32, i32) {
    %c0_i32 = arith.constant 0 : i32
    %c0_i32_0 = arith.constant 0 : i32
    %c0_i32_1 = arith.constant 0 : i32
    return %c0_i32, %c0_i32_0 : i32, i32
  }
  func.func @transform_2(%arg0: i32, %arg1: i32) -> (i32, i32, i32, i32) {
    %c0_i32 = arith.constant 0 : i32
    %c0_i32_0 = arith.constant 0 : i32
    %c0_i32_1 = arith.constant 0 : i32
    return %arg0, %arg1, %c0_i32, %c0_i32_0 : i32, i32, i32, i32
  }
}

module attributes {stable_mosaic.version = 11 : i64} {
  func.func @_head_kernel(%arg0: i32, %arg1: memref<1x8x8x128xf32, #tpu.memory_space<vmem>>, %arg2: memref<128x128xf32, #tpu.memory_space<vmem>>, %arg3: memref<1x128xf32, #tpu.memory_space<vmem>>, %arg4: memref<128x128xf32, #tpu.memory_space<vmem>>, %arg5: memref<1x128xf32, #tpu.memory_space<vmem>>, %arg6: memref<1x4x128xf32, #tpu.memory_space<vmem>>, %arg7: memref<1x1x128xf32, #tpu.memory_space<vmem>>) attributes {dimension_semantics = [#tpu.dimension_semantics<parallel>], iteration_bounds = array<i64: 2>, scalar_prefetch = 0 : i64, scratch_operands = 0 : i64, tpu.core_type = #tpu.core_type<tc>, window_params = [{transform_indices = @transform_0, window_bounds = array<i64: 1, 8, 8, 128>}, {pipeline_mode = #tpu.pipeline_mode<synchronous>, transform_indices = @transform_1, window_bounds = array<i64: 128, 128>}, {pipeline_mode = #tpu.pipeline_mode<synchronous>, transform_indices = @transform_2, window_bounds = array<i64: 1, 128>}, {pipeline_mode = #tpu.pipeline_mode<synchronous>, transform_indices = @transform_3, window_bounds = array<i64: 128, 128>}, {pipeline_mode = #tpu.pipeline_mode<synchronous>, transform_indices = @transform_4, window_bounds = array<i64: 1, 128>}, {transform_indices = @transform_5, window_bounds = array<i64: 1, 4, 128>}, {transform_indices = @transform_6, window_bounds = array<i64: 1, 1, 128>}]} {
    %c0 = arith.constant 0 : index
    %c0_0 = arith.constant 0 : index
    %c0_1 = arith.constant 0 : index
    %c0_2 = arith.constant 0 : index
    %0 = vector.load %arg1[%c0, %c0_0, %c0_1, %c0_2] : memref<1x8x8x128xf32, #tpu.memory_space<vmem>>, vector<1x8x8x128xf32>
    %1 = vector.shape_cast %0 : vector<1x8x8x128xf32> to vector<8x8x128xf32>
    %2 = vector.shape_cast %1 : vector<8x8x128xf32> to vector<4x2x8x128xf32>
    %cst = arith.constant dense<0xFF800000> : vector<4x2x128xf32>
    %3 = vector.multi_reduction <maximumf>, %2, %cst [2] : vector<4x2x8x128xf32> to vector<4x2x128xf32>
    %cst_3 = arith.constant dense<0xFF800000> : vector<4x128xf32>
    %4 = vector.multi_reduction <maximumf>, %3, %cst_3 [1] : vector<4x2x128xf32> to vector<4x128xf32>
    %c0_4 = arith.constant 0 : index
    %c0_5 = arith.constant 0 : index
    %c0_6 = arith.constant 0 : index
    %5 = vector.load %arg6[%c0_4, %c0_5, %c0_6] : memref<1x4x128xf32, #tpu.memory_space<vmem>>, vector<1x4x128xf32>
    %6 = vector.shape_cast %5 : vector<1x4x128xf32> to vector<4x128xf32>
    %7 = vector.shape_cast %4 : vector<4x128xf32> to vector<1x4x128xf32>
    tpu.vector_store %arg6[%c0_4, %c0_5, %c0_6], %7 {strides = array<i32>} : memref<1x4x128xf32, #tpu.memory_space<vmem>>, vector<1x4x128xf32>,
    %cst_7 = arith.constant dense<0xFF800000> : vector<128xf32>
    %8 = vector.multi_reduction <maximumf>, %4, %cst_7 [0] : vector<4x128xf32> to vector<128xf32>
    %9 = vector.shape_cast %8 : vector<128xf32> to vector<1x128xf32>
    %c0_8 = arith.constant 0 : index
    %c0_9 = arith.constant 0 : index
    %10 = vector.load %arg2[%c0_8, %c0_9] : memref<128x128xf32, #tpu.memory_space<vmem>>, vector<128x128xf32>
    %cst_10 = arith.constant dense<0.000000e+00> : vector<1x128xf32>
    %11 = tpu.matmul %9, %10, %cst_10 {dimension_numbers = #tpu.dot_dimension_numbers<[1], [0], [0], [1], [0, 0, 1, 1], [], []>} : vector<1x128xf32>, vector<128x128xf32>, vector<1x128xf32> -> vector<1x128xf32>
    %c0_11 = arith.constant 0 : index
    %c0_12 = arith.constant 0 : index
    %12 = vector.load %arg3[%c0_11, %c0_12] : memref<1x128xf32, #tpu.memory_space<vmem>>, vector<1x128xf32>
    %13 = arith.addf %11, %12 : vector<1x128xf32>
    %cst_13 = arith.constant 0.000000e+00 : f32
    %14 = vector.broadcast %cst_13 : f32 to vector<1x128xf32>
    %15 = arith.maximumf %13, %14 : vector<1x128xf32>
    %c0_14 = arith.constant 0 : index
    %c0_15 = arith.constant 0 : index
    %16 = vector.load %arg4[%c0_14, %c0_15] : memref<128x128xf32, #tpu.memory_space<vmem>>, vector<128x128xf32>
    %cst_16 = arith.constant dense<0.000000e+00> : vector<1x128xf32>
    %17 = tpu.matmul %15, %16, %cst_16 {dimension_numbers = #tpu.dot_dimension_numbers<[1], [0], [0], [1], [0, 0, 1, 1], [], []>} : vector<1x128xf32>, vector<128x128xf32>, vector<1x128xf32> -> vector<1x128xf32>
    %c0_17 = arith.constant 0 : index
    %c0_18 = arith.constant 0 : index
    %18 = vector.load %arg5[%c0_17, %c0_18] : memref<1x128xf32, #tpu.memory_space<vmem>>, vector<1x128xf32>
    %19 = arith.addf %17, %18 : vector<1x128xf32>
    %cst_19 = arith.constant 0.000000e+00 : f32
    %20 = vector.broadcast %cst_19 : f32 to vector<1x128xf32>
    %21 = arith.maximumf %19, %20 : vector<1x128xf32>
    %c0_20 = arith.constant 0 : index
    %c0_21 = arith.constant 0 : index
    %c0_22 = arith.constant 0 : index
    %22 = vector.load %arg7[%c0_20, %c0_21, %c0_22] : memref<1x1x128xf32, #tpu.memory_space<vmem>>, vector<1x1x128xf32>
    %23 = vector.shape_cast %22 : vector<1x1x128xf32> to vector<1x128xf32>
    %24 = vector.shape_cast %21 : vector<1x128xf32> to vector<1x1x128xf32>
    tpu.vector_store %arg7[%c0_20, %c0_21, %c0_22], %24 {strides = array<i32>} : memref<1x1x128xf32, #tpu.memory_space<vmem>>, vector<1x1x128xf32>,
    return
  }
  func.func @transform_0(%arg0: i32) -> (i32, i32, i32, i32) {
    %c0_i32 = arith.constant 0 : i32
    %c0_i32_0 = arith.constant 0 : i32
    %c0_i32_1 = arith.constant 0 : i32
    %c0_i32_2 = arith.constant 0 : i32
    return %arg0, %c0_i32, %c0_i32_0, %c0_i32_1 : i32, i32, i32, i32
  }
  func.func @transform_1(%arg0: i32) -> (i32, i32) {
    %c0_i32 = arith.constant 0 : i32
    %c0_i32_0 = arith.constant 0 : i32
    %c0_i32_1 = arith.constant 0 : i32
    return %c0_i32, %c0_i32_0 : i32, i32
  }
  func.func @transform_2(%arg0: i32) -> (i32, i32) {
    %c0_i32 = arith.constant 0 : i32
    %c0_i32_0 = arith.constant 0 : i32
    %c0_i32_1 = arith.constant 0 : i32
    return %c0_i32, %c0_i32_0 : i32, i32
  }
  func.func @transform_3(%arg0: i32) -> (i32, i32) {
    %c0_i32 = arith.constant 0 : i32
    %c0_i32_0 = arith.constant 0 : i32
    %c0_i32_1 = arith.constant 0 : i32
    return %c0_i32, %c0_i32_0 : i32, i32
  }
  func.func @transform_4(%arg0: i32) -> (i32, i32) {
    %c0_i32 = arith.constant 0 : i32
    %c0_i32_0 = arith.constant 0 : i32
    %c0_i32_1 = arith.constant 0 : i32
    return %c0_i32, %c0_i32_0 : i32, i32
  }
  func.func @transform_5(%arg0: i32) -> (i32, i32, i32) {
    %c0_i32 = arith.constant 0 : i32
    %c0_i32_0 = arith.constant 0 : i32
    %c0_i32_1 = arith.constant 0 : i32
    return %arg0, %c0_i32, %c0_i32_0 : i32, i32, i32
  }
  func.func @transform_6(%arg0: i32) -> (i32, i32, i32) {
    %c0_i32 = arith.constant 0 : i32
    %c0_i32_0 = arith.constant 0 : i32
    %c0_i32_1 = arith.constant 0 : i32
    return %arg0, %c0_i32, %c0_i32_0 : i32, i32, i32
  }
}

</mosaic_0001>

<llo_original>
// kernel: reid_forward.3
$region0: #{reid_forward.3}
  #allocation0 [shape = 'u32[]', space=smem, size = 0x4, offset = 0x4, fixed_abs, tag = 'smem constant byte address 0x4 - core index']
  #allocation1 [shape = 'u32[144,128]{1,0:T(1,128)}', space=vmem, size = 0x12000, scoped, tag = 'internal scratch']
  %s0 = inlined_call_operand.vmem [shape: f32[2,8,8,128], index: 0, kind: input, shape index: {}]
  %s1 = inlined_call_operand.vmem [shape: f32[128,128], index: 1, kind: input, shape index: {}]
  %s2 = inlined_call_operand.vmem [shape: f32[1,128], index: 2, kind: input, shape index: {}]
  %s3 = inlined_call_operand.vmem [shape: f32[128,128], index: 3, kind: input, shape index: {}]
  %s4 = inlined_call_operand.vmem [shape: f32[1,128], index: 4, kind: input, shape index: {}]
  %s5 = inlined_call_operand.vmem [shape: f32[2,4,128], index: 5, kind: output, shape index: {0}]
  %s6 = inlined_call_operand.hbm [shape: f32[2,1,128], index: 6, kind: output, shape index: {1}]
  %7 = xla_tuple %s5, %s6
  %s8 = sld [smem:[#allocation0]]
  $region61: #{reid_forward.3} parent=0
    _
  %s10 = ssub.s32 1, %s8
  %s11 = scalar_select 0, %s10, %s8
  $region1: #{reid_forward.3} parent=0
    #allocation2 [shape = 'u8[1024]{0}', space=vmem, size = 0x400, scoped, tag = 'output window, operand 1']
    #allocation3 [shape = 's32[2]{0}', space=sflag, size = 0x8, scoped, tag = 'scoped memory for reid_forward.3']
    %12 = vsyncpa [#allocation3], 0
    %s13 = scalar_lea.sflag [#allocation3], 1
    %14 = vsyncpa %s13, 0
    loop: start=0, step=1, limit=4
    $region2: #{reid_forward.3} parent=1 // loop_pre_header
      _
    $region3: #{reid_forward.3} parent=1 // loop_header
      %s16 = sphi 0, %s20
      %p17 = scmp.ge.s32.totalorder %s16, 4
      %s26 = sphi 0, %s28
      %s29 = sphi 0, %s26
      %s30 = sphi 0, %s29
      %s46 = sphi 0, %s30
      %s50 = sphi 0, %s50
      %s52 = sphi 0, %s50
      %s53 = sphi 0, %s52
      %s67 = sphi 0, %s53
      %s71 = sphi 0, %s71
      %s73 = sphi 0, %s71
      %s74 = sphi 0, %s73
      %s88 = sphi 0, %s74
      %s92 = sphi 0, %s92
      %s94 = sphi 0, %s92
      %s95 = sphi 0, %s94
      %s109 = sphi 0, %s95
      %s113 = sphi 0, %s113
      %s115 = sphi 0, %s113
      %s116 = sphi 0, %s115
      %s130 = sphi 0, %s116
      %s136 = sphi 0, %s138
      %s139 = sphi 0, %s136
      %s140 = sphi 0, %s139
      %s156 = sphi 0, %s140
      %s162 = sphi 0, %s164
      %s165 = sphi 0, %s162
      %s166 = sphi 0, %s165
      %s182 = sphi 0, %s166
    $region4: #{reid_forward.3} parent=1 // loop_header_branch
      %19 = sbr.rel (%p17) target = $region8
    $region5: #{reid_forward.3} parent=1 // loop_body
      %s21 = ssub.s32 %s16, 1
      %s22 = ssub.s32 %s16, 2
      %s23 = sadd.s32 %s16, 1
      %s24 = ssub.s32 %s16, %s23
      %p25 = scmp.eq.s32.totalorder %s24, 0
      %s27 = sadd.s32 %s26, 1
      %s28 = scalar_select %p25, %s26, %s27
      %p31 = pneg %p25
      %p32 = scmp.eq.s32.totalorder %s16, 1
      %p33 = por %p31, %p32
      %p34 = scmp.ne.s32.totalorder %s26, %s29
      %p35 = scmp.eq.s32.totalorder %s16, 0
      %p36 = por %p34, %p35
      %p37 = scmp.ne.s32.totalorder %s26, %s29
      %p38 = scmp.eq.s32.totalorder %s21, 1
      %p39 = por %p37, %p38
      %p40 = scmp.ne.s32.totalorder %s29, %s30
      %p41 = scmp.eq.s32.totalorder %s21, 0
      %p42 = por %p40, %p41
      %p43 = scmp.ne.s32.totalorder %s29, %s30
      %p44 = scmp.eq.s32.totalorder %s22, 1
      %p45 = por %p43, %p44
      %p47 = scmp.ne.s32.totalorder %s30, %s46
      %p48 = scmp.eq.s32.totalorder %s22, 0
      %p49 = por %p47, %p48
      %s51 = sadd.s32 %s50, 1
      %p54 = scmp.eq.s32.totalorder %s16, 1
      %p55 = scmp.ne.s32.totalorder %s50, %s52
      %p56 = scmp.eq.s32.totalorder %s16, 0
      %p57 = por %p55, %p56
      %p58 = scmp.ne.s32.totalorder %s50, %s52
      %p59 = scmp.eq.s32.totalorder %s21, 1
      %p60 = por %p58, %p59
      %p61 = scmp.ne.s32.totalorder %s52, %s53
      %p62 = scmp.eq.s32.totalorder %s21, 0
      %p63 = por %p61, %p62
      %p64 = scmp.ne.s32.totalorder %s52, %s53
      %p65 = scmp.eq.s32.totalorder %s22, 1
      %p66 = por %p64, %p65
      %p68 = scmp.ne.s32.totalorder %s53, %s67
      %p69 = scmp.eq.s32.totalorder %s22, 0
      %p70 = por %p68, %p69
      %s72 = sadd.s32 %s71, 1
      %p75 = scmp.eq.s32.totalorder %s16, 1
      %p76 = scmp.ne.s32.totalorder %s71, %s73
      %p77 = scmp.eq.s32.totalorder %s16, 0
      %p78 = por %p76, %p77
      %p79 = scmp.ne.s32.totalorder %s71, %s73
      %p80 = scmp.eq.s32.totalorder %s21, 1
      %p81 = por %p79, %p80
      %p82 = scmp.ne.s32.totalorder %s73, %s74
      %p83 = scmp.eq.s32.totalorder %s21, 0
      %p84 = por %p82, %p83
      %p85 = scmp.ne.s32.totalorder %s73, %s74
      %p86 = scmp.eq.s32.totalorder %s22, 1
      %p87 = por %p85, %p86
      %p89 = scmp.ne.s32.totalorder %s74, %s88
      %p90 = scmp.eq.s32.totalorder %s22, 0
      %p91 = por %p89, %p90
      %s93 = sadd.s32 %s92, 1
      %p96 = scmp.eq.s32.totalorder %s16, 1
      %p97 = scmp.ne.s32.totalorder %s92, %s94
      %p98 = scmp.eq.s32.totalorder %s16, 0
      %p99 = por %p97, %p98
      %p100 = scmp.ne.s32.totalorder %s92, %s94
      %p101 = scmp.eq.s32.totalorder %s21, 1
      %p102 = por %p100, %p101
      %p103 = scmp.ne.s32.totalorder %s94, %s95
      %p104 = scmp.eq.s32.totalorder %s21, 0
      %p105 = por %p103, %p104
      %p106 = scmp.ne.s32.totalorder %s94, %s95
      %p107 = scmp.eq.s32.totalorder %s22, 1
      %p108 = por %p106, %p107
      %p110 = scmp.ne.s32.totalorder %s95, %s109
      %p111 = scmp.eq.s32.totalorder %s22, 0
      %p112 = por %p110, %p111
      %s114 = sadd.s32 %s113, 1
      %p117 = scmp.eq.s32.totalorder %s16, 1
      %p118 = scmp.ne.s32.totalorder %s113, %s115
      %p119 = scmp.eq.s32.totalorder %s16, 0
      %p120 = por %p118, %p119
      %p121 = scmp.ne.s32.totalorder %s113, %s115
      %p122 = scmp.eq.s32.totalorder %s21, 1
      %p123 = por %p121, %p122
      %p124 = scmp.ne.s32.totalorder %s115, %s116
      %p125 = scmp.eq.s32.totalorder %s21, 0
      %p126 = por %p124, %p125
      %p127 = scmp.ne.s32.totalorder %s115, %s116
      %p128 = scmp.eq.s32.totalorder %s22, 1
      %p129 = por %p127, %p128
      %p131 = scmp.ne.s32.totalorder %s116, %s130
      %p132 = scmp.eq.s32.totalorder %s22, 0
      %p133 = por %p131, %p132
      %s134 = ssub.s32 %s16, %s23
      %p135 = scmp.eq.s32.totalorder %s134, 0
      %s137 = sadd.s32 %s136, 1
      %s138 = scalar_select %p135, %s136, %s137
      %p141 = pneg %p135
      %p142 = scmp.eq.s32.totalorder %s16, 1
      %p143 = por %p141, %p142
      %p144 = scmp.ne.s32.totalorder %s136, %s139
      %p145 = scmp.eq.s32.totalorder %s16, 0
      %p146 = por %p144, %p145
      %p147 = scmp.ne.s32.totalorder %s136, %s139
      %p148 = scmp.eq.s32.totalorder %s21, 1
      %p149 = por %p147, %p148
      %p150 = scmp.ne.s32.totalorder %s139, %s140
      %p151 = scmp.eq.s32.totalorder %s21, 0
      %p152 = por %p150, %p151
      %p153 = scmp.ne.s32.totalorder %s139, %s140
      %p154 = scmp.eq.s32.totalorder %s22, 1
      %p155 = por %p153, %p154
      %p157 = scmp.ne.s32.totalorder %s140, %s156
      %p158 = scmp.eq.s32.totalorder %s22, 0
      %p159 = por %p157, %p158
      %s160 = ssub.s32 %s16, %s23
      %p161 = scmp.eq.s32.totalorder %s160, 0
      %s163 = sadd.s32 %s162, 1
      %s164 = scalar_select %p161, %s162, %s163
      %p167 = pneg %p161
      %p168 = scmp.eq.s32.totalorder %s16, 1
      %p169 = por %p167, %p168
      %p170 = scmp.ne.s32.totalorder %s162, %s165
      %p171 = scmp.eq.s32.totalorder %s16, 0
      %p172 = por %p170, %p171
      %p173 = scmp.ne.s32.totalorder %s162, %s165
      %p174 = scmp.eq.s32.totalorder %s21, 1
      %p175 = por %p173, %p174
      %p176 = scmp.ne.s32.totalorder %s165, %s166
      %p177 = scmp.eq.s32.totalorder %s21, 0
      %p178 = por %p176, %p177
      %p179 = scmp.ne.s32.totalorder %s165, %s166
      %p180 = scmp.eq.s32.totalorder %s22, 1
      %p181 = por %p179, %p180
      %p183 = scmp.ne.s32.totalorder %s166, %s182
      %p184 = scmp.eq.s32.totalorder %s22, 0
      %p185 = por %p183, %p184
      %p186 = scmp.le.s32.totalorder 1, %s16
      %p187 = scmp.lt.s32.totalorder %s16, 3
      %p188 = pnand %p186, %p187
      %p189 = pneg %p188
      // Predicated region
      $region9: #{reid_forward.3} parent=5 // pred_check
        _
      $region10: #{reid_forward.3} parent=5 // pred_check_branch
        %191 = sbr.rel (%p188) target = $region12
      $region11: #{reid_forward.3} parent=5 // pred_region
        %s192 = ssub.s32 %s16, 1
        // Predicated region
        $region13: #{reid_forward.3} parent=11 // pred_check
          %p193 = pneg %p63
        $region14: #{reid_forward.3} parent=11 // pred_check_branch
          %195 = sbr.rel (%p193) target = $region16
        $region15: #{reid_forward.3} parent=11 // pred_region
          _
        $region16: #{reid_forward.3} parent=11 // pred_fallthru
          _
        // Predicated region
        $region17: #{reid_forward.3} parent=11 // pred_check
          %p196 = pneg %p84
        $region18: #{reid_forward.3} parent=11 // pred_check_branch
          %198 = sbr.rel (%p196) target = $region20
        $region19: #{reid_forward.3} parent=11 // pred_region
          _
        $region20: #{reid_forward.3} parent=11 // pred_fallthru
          _
        // Predicated region
        $region21: #{reid_forward.3} parent=11 // pred_check
          %p199 = pneg %p105
        $region22: #{reid_forward.3} parent=11 // pred_check_branch
          %201 = sbr.rel (%p199) target = $region24
        $region23: #{reid_forward.3} parent=11 // pred_region
          _
        $region24: #{reid_forward.3} parent=11 // pred_fallthru
          _
        // Predicated region
        $region25: #{reid_forward.3} parent=11 // pred_check
          %p202 = pneg %p126
        $region26: #{reid_forward.3} parent=11 // pred_check_branch
          %204 = sbr.rel (%p202) target = $region28
        $region27: #{reid_forward.3} parent=11 // pred_region
          _
        $region28: #{reid_forward.3} parent=11 // pred_fallthru
          _
      $region12: #{reid_forward.3} parent=5 // pred_fallthru
        _
      %p205 = scmp.lt.s32.totalorder %s16, 2
      // Predicated region
      $region29: #{reid_forward.3} parent=5 // pred_check
        %p206 = pneg %p205
      $region30: #{reid_forward.3} parent=5 // pred_check_branch
        %208 = sbr.rel (%p206) target = $region32
      $region31: #{reid_forward.3} parent=5 // pred_region
        // Predicated region
        $region33: #{reid_forward.3} parent=31 // pred_check
          %p209 = pneg %p36
        $region34: #{reid_forward.3} parent=31 // pred_check_branch
          %211 = sbr.rel (%p209) target = $region36
        $region35: #{reid_forward.3} parent=31 // pred_region
          %p212 = scmp.lt.s32.totalorder %s16, 1
          %s213 = scalar_select %p212, %s16, 1
          %s214 = smul.addr %s213, 8
          %s215 = smul.addr %s214, 8
          %s216 = scalar_lea.vmem %s0, %s215
        $region36: #{reid_forward.3} parent=31 // pred_fallthru
          _
      $region32: #{reid_forward.3} parent=5 // pred_fallthru
        _
      %p217 = scmp.le.s32.totalorder 1, %s16
      %p218 = scmp.lt.s32.totalorder %s16, 3
      %p219 = pnand %p217, %p218
      %p220 = pneg %p219
      // Predicated region
      $region37: #{reid_forward.3} parent=5 // pred_check
        _
      $region38: #{reid_forward.3} parent=5 // pred_check_branch
        %222 = sbr.rel (%p219) target = $region40
      $region39: #{reid_forward.3} parent=5 // pred_region
        %s223 = ssub.s32 %s16, 1
        %p224 = scmp.lt.s32.totalorder %s21, 1
        %s225 = scalar_select %p224, %s21, 1
        %s226 = smul.addr %s225, 8
        %s227 = smul.addr %s226, 8
        %s228 = scalar_lea.vmem %s0, %s227
        %p229 = pneg %p42
        %p230 = pneg %p39
        %p231 = pneg %p63
        %p232 = pneg %p60
        %p233 = pneg %p84
        %p234 = pneg %p81
        %p235 = pneg %p105
        %p236 = pneg %p102
        %p237 = pneg %p126
        %p238 = pneg %p123
        %p239 = pneg %p152
        %p240 = pneg %p149
        %p241 = scmp.lt.s32.totalorder %s21, 1
        %s242 = scalar_select %p241, %s21, 1
        %s243 = smul.addr %s242, 4
        %s244 = scalar_lea.vmem %s5, %s243
        %p245 = pneg %p178
        %p246 = pneg %p175
        %s247 = sand.u32 %s165, 1
        %s248 = scalar_lea.sflag [#allocation3], %s247
        %s249 = sand.u32 %s165, 1
        %s250 = scalar_lea.vmem [#allocation2], %s249
        %p251 = scmp.lt.s32.totalorder %s21, 1
        %s252 = scalar_select %p251, %s21, 1
        %s253 = smul.addr %s252, 8
        %s254 = smul.addr %s253, 8
        %s255 = scalar_lea.vmem %s0, %s254
        %p256 = scmp.lt.s32.totalorder %s21, 1
        %s257 = scalar_select %p256, %s21, 1
        %s258 = smul.addr %s257, 4
        %s259 = scalar_lea.vmem %s5, %s258
        %v260 = vld [vmem:[%s255] sm:$0xff]
        %v261 = vld [vmem:[%s255 + $0x8] sm:$0xff]
        %v262 = vld [vmem:[%s255 + $0x10] sm:$0xff]
        %v263 = vld [vmem:[%s255 + $0x18] sm:$0xff]
        %v264 = vld [vmem:[%s255 + $0x20] sm:$0xff]
        %v265 = vld [vmem:[%s255 + $0x28] sm:$0xff]
        %v266 = vld [vmem:[%s255 + $0x30] sm:$0xff]
        %v267 = vld [vmem:[%s255 + $0x38] sm:$0xff]
        %v268 = vrot.slane %v260, 4
        %v269 = vmax.f32 %v260, %v268
        %v270 = vrot.slane %v269, 2
        %v271 = vmax.f32 %v269, %v270
        %v272 = vrot.slane %v271, 1
        %v273 = vmax.f32 %v271, %v272
        %v274 = vrot.slane %v261, 4
        %v275 = vmax.f32 %v261, %v274
        %v276 = vrot.slane %v275, 2
        %v277 = vmax.f32 %v275, %v276
        %v278 = vrot.slane %v277, 1
        %v279 = vmax.f32 %v277, %v278
        %v280 = vrot.slane %v262, 4
        %v281 = vmax.f32 %v262, %v280
        %v282 = vrot.slane %v281, 2
        %v283 = vmax.f32 %v281, %v282
        %v284 = vrot.slane %v283, 1
        %v285 = vmax.f32 %v283, %v284
        %v286 = vrot.slane %v263, 4
        %v287 = vmax.f32 %v263, %v286
        %v288 = vrot.slane %v287, 2
        %v289 = vmax.f32 %v287, %v288
        %v290 = vrot.slane %v289, 1
        %v291 = vmax.f32 %v289, %v290
        %v292 = vrot.slane %v264, 4
        %v293 = vmax.f32 %v264, %v292
        %v294 = vrot.slane %v293, 2
        %v295 = vmax.f32 %v293, %v294
        %v296 = vrot.slane %v295, 1
        %v297 = vmax.f32 %v295, %v296
        %v298 = vrot.slane %v265, 4
        %v299 = vmax.f32 %v265, %v298
        %v300 = vrot.slane %v299, 2
        %v301 = vmax.f32 %v299, %v300
        %v302 = vrot.slane %v301, 1
        %v303 = vmax.f32 %v301, %v302
        %v304 = vrot.slane %v266, 4
        %v305 = vmax.f32 %v266, %v304
        %v306 = vrot.slane %v305, 2
        %v307 = vmax.f32 %v305, %v306
        %v308 = vrot.slane %v307, 1
        %v309 = vmax.f32 %v307, %v308
        %v310 = vrot.slane %v267, 4
        %v311 = vmax.f32 %v267, %v310
        %v312 = vrot.slane %v311, 2
        %v313 = vmax.f32 %v311, %v312
        %v314 = vrot.slane %v313, 1
        %v315 = vmax.f32 %v313, %v314
        %v316 = vmax.f32 %v273, %v279
        %v317 = vmax.f32 %v285, %v291
        %v318 = vmax.f32 %v297, %v303
        %v319 = vmax.f32 %v309, %v315
        %vm324 = vcmask 1041409
        %v325 = vsel %vm324, %v317, %v316
        %vm326 = vcmask 1042434
        %v327 = vsel %vm326, %v318, %v325
        %vm328 = vcmask 1043459
        %v329 = vsel %vm328, %v319, %v327
        %331 = vst [vmem:[%s259] sm:$0xf] %v329
        %v332 = vmax.f32 %v316, %v317
        %v333 = vmax.f32 %v318, %v319
        %v334 = vmax.f32 %v332, %v333
        %v335 = vld [vmem:[%s1] sm:$0xff]
        %v336 = vld [vmem:[%s1 + $0x8] sm:$0xff]
        %v337 = vld [vmem:[%s1 + $0x10] sm:$0xff]
        %v338 = vld [vmem:[%s1 + $0x18] sm:$0xff]
        %v339 = vld [vmem:[%s1 + $0x20] sm:$0xff]
        %v340 = vld [vmem:[%s1 + $0x28] sm:$0xff]
        %v341 = vld [vmem:[%s1 + $0x30] sm:$0xff]
        %v342 = vld [vmem:[%s1 + $0x38] sm:$0xff]
        %v343 = vld [vmem:[%s1 + $0x40] sm:$0xff]
        %v344 = vld [vmem:[%s1 + $0x48] sm:$0xff]
        %v345 = vld [vmem:[%s1 + $0x50] sm:$0xff]
        %v346 = vld [vmem:[%s1 + $0x58] sm:$0xff]
        %v347 = vld [vmem:[%s1 + $0x60] sm:$0xff]
        %v348 = vld [vmem:[%s1 + $0x68] sm:$0xff]
        %v349 = vld [vmem:[%s1 + $0x70] sm:$0xff]
        %v350 = vld [vmem:[%s1 + $0x78] sm:$0xff]
        %v351 = vld [vmem:[%s2] sm:$0x1]
        %352 = vmatprep.subr.mxu0 0.0
        %353 = vmatpush1.msra.mxu0 %v350
        %354 = vmatprep.subr.mxu0 0.0
        %355 = vmatpush1.msra.mxu0 %v349
        %356 = vmatprep.subr.mxu0 0.0
        %357 = vmatpush1.msra.mxu0 %v348
        %358 = vmatprep.subr.mxu0 0.0
        %359 = vmatpush1.msra.mxu0 %v347
        %360 = vmatprep.subr.mxu0 0.0
        %361 = vmatpush1.msra.mxu0 %v346
        %362 = vmatprep.subr.mxu0 0.0
        %363 = vmatpush1.msra.mxu0 %v345
        %364 = vmatprep.subr.mxu0 0.0
        %365 = vmatpush1.msra.mxu0 %v344
        %366 = vmatprep.subr.mxu0 0.0
        %367 = vmatpush1.msra.mxu0 %v343
        %368 = vmatprep.subr.mxu0 0.0
        %369 = vmatpush1.msra.mxu0 %v342
        %370 = vmatprep.subr.mxu0 0.0
        %371 = vmatpush1.msra.mxu0 %v341
        %372 = vmatprep.subr.mxu0 0.0
        %373 = vmatpush1.msra.mxu0 %v340
        %374 = vmatprep.subr.mxu0 0.0
        %375 = vmatpush1.msra.mxu0 %v339
        %376 = vmatprep.subr.mxu0 0.0
        %377 = vmatpush1.msra.mxu0 %v338
        %378 = vmatprep.subr.mxu0 0.0
        %379 = vmatpush1.msra.mxu0 %v337
        %380 = vmatprep.subr.mxu0 0.0
        %381 = vmatpush1.msra.mxu0 %v336
        %382 = vmatprep.subr.mxu0 0.0
        %383 = vmatpush1.msra.mxu0 %v335
        %384 = vmatprep.subr.mxu0 0.0
        %385 = vmatpush2.msra.mxu0 0.0
        %386 = vmatprep.subr.mxu0 0.0
        %387 = vmatpush2.msra.mxu0 0.0
        %388 = vmatprep.subr.mxu0 0.0
        %389 = vmatpush2.msra.mxu0 0.0
        %390 = vmatprep.subr.mxu0 0.0
        %391 = vmatpush2.msra.mxu0 0.0
        %392 = vmatprep.subr.mxu0 0.0
        %393 = vmatpush2.msra.mxu0 0.0
        %394 = vmatprep.subr.mxu0 0.0
        %395 = vmatpush2.msra.mxu0 0.0
        %396 = vmatprep.subr.mxu0 0.0
        %397 = vmatpush2.msra.mxu0 0.0
        %398 = vmatprep.subr.mxu0 0.0
        %399 = vmatpush2.msra.mxu0 0.0
        %400 = vmatprep.subr.mxu0 0.0
        %401 = vmatpush2.msra.mxu0 0.0
        %402 = vmatprep.subr.mxu0 0.0
        %403 = vmatpush2.msra.mxu0 0.0
        %404 = vmatprep.subr.mxu0 0.0
        %405 = vmatpush2.msra.mxu0 0.0
        %406 = vmatprep.subr.mxu0 0.0
        %407 = vmatpush2.msra.mxu0 0.0
        %408 = vmatprep.subr.mxu0 0.0
        %409 = vmatpush2.msra.mxu0 0.0
        %410 = vmatprep.subr.mxu0 0.0
        %411 = vmatpush2.msra.mxu0 0.0
        %412 = vmatprep.subr.mxu0 0.0
        %413 = vmatpush2.msra.mxu0 0.0
        %414 = vmatprep.subr.mxu0 0.0
        %415 = vmatpush2.msra.mxu0 0.0
        %416 = vmatprep.mubr.f32.mxu0 0.0
        %417 = vmatmul.mubr.f32.gmra.mxu0 %v334
        %v418 = vpop.f32.mrf.mxu0
        %v419 = vadd.f32 %v351, %v418
        %v420 = vpop.f32.mrf.mxu0
        %421 = vdwg.mxu0
        %v422 = vmax.f32 %v419, 0.0
        %v423 = vld [vmem:[%s3] sm:$0xff]
        %v424 = vld [vmem:[%s3 + $0x8] sm:$0xff]
        %v425 = vld [vmem:[%s3 + $0x10] sm:$0xff]
        %v426 = vld [vmem:[%s3 + $0x18] sm:$0xff]
        %v427 = vld [vmem:[%s3 + $0x20] sm:$0xff]
        %v428 = vld [vmem:[%s3 + $0x28] sm:$0xff]
        %v429 = vld [vmem:[%s3 + $0x30] sm:$0xff]
        %v430 = vld [vmem:[%s3 + $0x38] sm:$0xff]
        %v431 = vld [vmem:[%s3 + $0x40] sm:$0xff]
        %v432 = vld [vmem:[%s3 + $0x48] sm:$0xff]
        %v433 = vld [vmem:[%s3 + $0x50] sm:$0xff]
        %v434 = vld [vmem:[%s3 + $0x58] sm:$0xff]
        %v435 = vld [vmem:[%s3 + $0x60] sm:$0xff]
        %v436 = vld [vmem:[%s3 + $0x68] sm:$0xff]
        %v437 = vld [vmem:[%s3 + $0x70] sm:$0xff]
        %v438 = vld [vmem:[%s3 + $0x78] sm:$0xff]
        %v439 = vld [vmem:[%s4] sm:$0x1]
        %440 = vmatprep.subr.mxu0 0.0
        %441 = vmatpush1.msra.mxu0 %v438
        %442 = vmatprep.subr.mxu0 0.0
        %443 = vmatpush1.msra.mxu0 %v437
        %444 = vmatprep.subr.mxu0 0.0
        %445 = vmatpush1.msra.mxu0 %v436
        %446 = vmatprep.subr.mxu0 0.0
        %447 = vmatpush1.msra.mxu0 %v435
        %448 = vmatprep.subr.mxu0 0.0
        %449 = vmatpush1.msra.mxu0 %v434
        %450 = vmatprep.subr.mxu0 0.0
        %451 = vmatpush1.msra.mxu0 %v433
        %452 = vmatprep.subr.mxu0 0.0
        %453 = vmatpush1.msra.mxu0 %v432
        %454 = vmatprep.subr.mxu0 0.0
        %455 = vmatpush1.msra.mxu0 %v431
        %456 = vmatprep.subr.mxu0 0.0
        %457 = vmatpush1.msra.mxu0 %v430
        %458 = vmatprep.subr.mxu0 0.0
        %459 = vmatpush1.msra.mxu0 %v429
        %460 = vmatprep.subr.mxu0 0.0
        %461 = vmatpush1.msra.mxu0 %v428
        %462 = vmatprep.subr.mxu0 0.0
        %463 = vmatpush1.msra.mxu0 %v427
        %464 = vmatprep.subr.mxu0 0.0
        %465 = vmatpush1.msra.mxu0 %v426
        %466 = vmatprep.subr.mxu0 0.0
        %467 = vmatpush1.msra.mxu0 %v425
        %468 = vmatprep.subr.mxu0 0.0
        %469 = vmatpush1.msra.mxu0 %v424
        %470 = vmatprep.subr.mxu0 0.0
        %471 = vmatpush1.msra.mxu0 %v423
        %472 = vmatprep.subr.mxu0 0.0
        %473 = vmatpush2.msra.mxu0 0.0
        %474 = vmatprep.subr.mxu0 0.0
        %475 = vmatpush2.msra.mxu0 0.0
        %476 = vmatprep.subr.mxu0 0.0
        %477 = vmatpush2.msra.mxu0 0.0
        %478 = vmatprep.subr.mxu0 0.0
        %479 = vmatpush2.msra.mxu0 0.0
        %480 = vmatprep.subr.mxu0 0.0
        %481 = vmatpush2.msra.mxu0 0.0
        %482 = vmatprep.subr.mxu0 0.0
        %483 = vmatpush2.msra.mxu0 0.0
        %484 = vmatprep.subr.mxu0 0.0
        %485 = vmatpush2.msra.mxu0 0.0
        %486 = vmatprep.subr.mxu0 0.0
        %487 = vmatpush2.msra.mxu0 0.0
        %488 = vmatprep.subr.mxu0 0.0
        %489 = vmatpush2.msra.mxu0 0.0
        %490 = vmatprep.subr.mxu0 0.0
        %491 = vmatpush2.msra.mxu0 0.0
        %492 = vmatprep.subr.mxu0 0.0
        %493 = vmatpush2.msra.mxu0 0.0
        %494 = vmatprep.subr.mxu0 0.0
        %495 = vmatpush2.msra.mxu0 0.0
        %496 = vmatprep.subr.mxu0 0.0
        %497 = vmatpush2.msra.mxu0 0.0
        %498 = vmatprep.subr.mxu0 0.0
        %499 = vmatpush2.msra.mxu0 0.0
        %500 = vmatprep.subr.mxu0 0.0
        %501 = vmatpush2.msra.mxu0 0.0
        %502 = vmatprep.subr.mxu0 0.0
        %503 = vmatpush2.msra.mxu0 0.0
        %504 = vmatprep.mubr.f32.mxu0 0.0
        %505 = vmatmul.mubr.f32.gmra.mxu0 %v422
        %v506 = vpop.f32.mrf.mxu0
        %v507 = vadd.f32 %v439, %v506
        %v508 = vpop.f32.mrf.mxu0
        %509 = vdwg.mxu0
        %v510 = vmax.f32 %v507, 0.0
        %511 = vst [vmem:[%s250] sm:$0x1] %v510
        %p512 = scmp.lt.s32.totalorder %s21, 1
        %s513 = scalar_select %p512, %s21, 1
        %s514 = smul.addr %s513, 4
        %s515 = scalar_lea.vmem %s5, %s514
        %s516 = sand.u32 %s165, 1
        %s517 = scalar_lea.sflag [#allocation3], %s516
        %s518 = sand.u32 %s165, 1
        %s519 = scalar_lea.vmem [#allocation2], %s518
        // Predicated region
        $region41: #{reid_forward.3} parent=39 // pred_check
          %p520 = pneg %p149
        $region42: #{reid_forward.3} parent=39 // pred_check_branch
          %522 = sbr.rel (%p520) target = $region44
        $region43: #{reid_forward.3} parent=39 // pred_region
          _
        $region44: #{reid_forward.3} parent=39 // pred_fallthru
          _
        // Predicated region
        $region45: #{reid_forward.3} parent=39 // pred_check
          %p523 = pneg %p175
        $region46: #{reid_forward.3} parent=39 // pred_check_branch
          %525 = sbr.rel (%p523) target = $region48
        $region47: #{reid_forward.3} parent=39 // pred_region
          %s527 = ssub.s32 16, 16
          %528 = vsyncadd %s517, %s527
          %s529 = smul.addr %s21, 16
          %s530 = scalar_lea.hbm %s6, %s529
          %s532 = sshll.u32 %s519, 4
          %s533 = int_to_ptr.vmem [resolvable:$true] %s532
          %535 = dma.vmem_to_hbm [thread:$0]  %s533, 16, %s530, %s517
        $region48: #{reid_forward.3} parent=39 // pred_fallthru
          _
      $region40: #{reid_forward.3} parent=5 // pred_fallthru
        _
      %p536 = scmp.le.s32.totalorder 2, %s16
      // Predicated region
      $region49: #{reid_forward.3} parent=5 // pred_check
        %p537 = pneg %p536
      $region50: #{reid_forward.3} parent=5 // pred_check_branch
        %539 = sbr.rel (%p537) target = $region52
      $region51: #{reid_forward.3} parent=5 // pred_region
        %s540 = ssub.s32 %s16, 2
        // Predicated region
        $region53: #{reid_forward.3} parent=51 // pred_check
          %p541 = pneg %p155
        $region54: #{reid_forward.3} parent=51 // pred_check_branch
          %543 = sbr.rel (%p541) target = $region56
        $region55: #{reid_forward.3} parent=51 // pred_region
          %p544 = scmp.lt.s32.totalorder %s22, 1
          %s545 = scalar_select %p544, %s22, 1
          %s546 = smul.addr %s545, 4
          %s547 = scalar_lea.vmem %s5, %s546
        $region56: #{reid_forward.3} parent=51 // pred_fallthru
          _
        // Predicated region
        $region57: #{reid_forward.3} parent=51 // pred_check
          %p548 = pneg %p181
        $region58: #{reid_forward.3} parent=51 // pred_check_branch
          %550 = sbr.rel (%p548) target = $region60
        $region59: #{reid_forward.3} parent=51 // pred_region
          %s551 = sand.u32 %s166, 1
          %s552 = scalar_lea.sflag [#allocation3], %s551
          %s553 = sand.u32 %s166, 1
          %s554 = scalar_lea.vmem [#allocation2], %s553
          %555 = dma.done %s552, 16
        $region60: #{reid_forward.3} parent=51 // pred_fallthru
          _
      $region52: #{reid_forward.3} parent=5 // pred_fallthru
        _
    $region6: #{reid_forward.3} parent=1 // loop_footer
      %s20 = sadd.s32 1, %s16
    $region7: #{reid_forward.3} parent=1 // loop_footer_branch
      %15 = sbr.rel target = $region3
    $region8: #{reid_forward.3} parent=1 // loop_exit
      _
    %556 = vsyncpa [#allocation3], 1
    %s557 = scalar_lea.sflag [#allocation3], 1
    %558 = vsyncpa %s557, 1

// kernel: reid_forward.2
$region0: #{reid_forward.2}
  #allocation0 [shape = 'u32[]', space=smem, size = 0x4, offset = 0x4, fixed_abs, tag = 'smem constant byte address 0x4 - core index']
  #allocation1 [shape = 'u32[144,128]{1,0:T(1,128)}', space=vmem, size = 0x12000, scoped, tag = 'internal scratch']
  #allocation2 [shape = 'f32[216,128]{1,0:T(8,128)}', space=vmem, size = 0x1b000, scoped, tag = 'scratch operand']
  %s0 = inlined_call_operand.vmem [shape: f32[2,408,256], index: 0, kind: input, shape index: {}]
  %s1 = inlined_call_operand.vmem [shape: f32[256,128], index: 1, kind: input, shape index: {}]
  %s2 = inlined_call_operand.vmem [shape: f32[2,8,8,128], index: 2, kind: output, shape index: {}]
  %s3 = sld [smem:[#allocation0]]
  $region41: #{reid_forward.2} parent=0
    _
  %s5 = ssub.s32 1, %s3
  %s6 = scalar_select 0, %s5, %s3
  loop: start=0, step=1, limit=6
  $region2: #{reid_forward.2} parent=0 // loop_pre_header
    _
  $region3: #{reid_forward.2} parent=0 // loop_header
    %s8 = sphi 0, %s12
    %p9 = scmp.ge.s32.totalorder %s8, 6
    %s15 = sphi 0, %s27
    %s16 = sphi 0, %s23
    %s17 = sphi 0, %s15
    %s18 = sphi 0, %s16
    %s19 = sphi 0, %s17
    %s20 = sphi 0, %s18
    %s30 = sphi 0, %s32
    %s33 = sphi 0, %s30
    %s34 = sphi 0, %s33
    %s50 = sphi 0, %s34
    %s54 = sphi 0, %s54
    %s56 = sphi 0, %s54
    %s57 = sphi 0, %s56
    %s71 = sphi 0, %s57
    %s79 = sphi 0, %s81
    %s82 = sphi 0, %s79
    %s83 = sphi 0, %s82
    %s99 = sphi 0, %s83
  $region4: #{reid_forward.2} parent=0 // loop_header_branch
    %11 = sbr.rel (%p9) target = $region8
  $region5: #{reid_forward.2} parent=0 // loop_body
    %s13 = ssub.s32 %s8, 1
    %s14 = ssub.s32 %s8, 2
    %s21 = sadd.s32 1, %s16
    %p22 = scmp.ge.s32.totalorder %s21, 2
    %s23 = scalar_select %p22, 0, %s21
    %s24 = sadd.s32 1, %s15
    %s25 = scalar_select %p22, %s24, %s15
    %p26 = scmp.ge.s32.totalorder %s25, 2
    %s27 = scalar_select %p26, 0, %s25
    %s28 = ssub.s32 %s15, %s27
    %p29 = scmp.eq.s32.totalorder %s28, 0
    %s31 = sadd.s32 %s30, 1
    %s32 = scalar_select %p29, %s30, %s31
    %p35 = pneg %p29
    %p36 = scmp.eq.s32.totalorder %s8, 3
    %p37 = por %p35, %p36
    %p38 = scmp.ne.s32.totalorder %s30, %s33
    %p39 = scmp.eq.s32.totalorder %s8, 0
    %p40 = por %p38, %p39
    %p41 = scmp.ne.s32.totalorder %s30, %s33
    %p42 = scmp.eq.s32.totalorder %s13, 3
    %p43 = por %p41, %p42
    %p44 = scmp.ne.s32.totalorder %s33, %s34
    %p45 = scmp.eq.s32.totalorder %s13, 0
    %p46 = por %p44, %p45
    %p47 = scmp.ne.s32.totalorder %s33, %s34
    %p48 = scmp.eq.s32.totalorder %s14, 3
    %p49 = por %p47, %p48
    %p51 = scmp.ne.s32.totalorder %s34, %s50
    %p52 = scmp.eq.s32.totalorder %s14, 0
    %p53 = por %p51, %p52
    %s55 = sadd.s32 %s54, 1
    %p58 = scmp.eq.s32.totalorder %s8, 3
    %p59 = scmp.ne.s32.totalorder %s54, %s56
    %p60 = scmp.eq.s32.totalorder %s8, 0
    %p61 = por %p59, %p60
    %p62 = scmp.ne.s32.totalorder %s54, %s56
    %p63 = scmp.eq.s32.totalorder %s13, 3
    %p64 = por %p62, %p63
    %p65 = scmp.ne.s32.totalorder %s56, %s57
    %p66 = scmp.eq.s32.totalorder %s13, 0
    %p67 = por %p65, %p66
    %p68 = scmp.ne.s32.totalorder %s56, %s57
    %p69 = scmp.eq.s32.totalorder %s14, 3
    %p70 = por %p68, %p69
    %p72 = scmp.ne.s32.totalorder %s57, %s71
    %p73 = scmp.eq.s32.totalorder %s14, 0
    %p74 = por %p72, %p73
    %s75 = ssub.s32 %s15, %s27
    %s76 = ssub.s32 %s16, %s23
    %s77 = sor.u32 %s75, %s76
    %p78 = scmp.eq.s32.totalorder %s77, 0
    %s80 = sadd.s32 %s79, 1
    %s81 = scalar_select %p78, %s79, %s80
    %p84 = pneg %p78
    %p85 = scmp.eq.s32.totalorder %s8, 3
    %p86 = por %p84, %p85
    %p87 = scmp.ne.s32.totalorder %s79, %s82
    %p88 = scmp.eq.s32.totalorder %s8, 0
    %p89 = por %p87, %p88
    %p90 = scmp.ne.s32.totalorder %s79, %s82
    %p91 = scmp.eq.s32.totalorder %s13, 3
    %p92 = por %p90, %p91
    %p93 = scmp.ne.s32.totalorder %s82, %s83
    %p94 = scmp.eq.s32.totalorder %s13, 0
    %p95 = por %p93, %p94
    %p96 = scmp.ne.s32.totalorder %s82, %s83
    %p97 = scmp.eq.s32.totalorder %s14, 3
    %p98 = por %p96, %p97
    %p100 = scmp.ne.s32.totalorder %s83, %s99
    %p101 = scmp.eq.s32.totalorder %s14, 0
    %p102 = por %p100, %p101
    %p103 = scmp.le.s32.totalorder 1, %s8
    %p104 = scmp.lt.s32.totalorder %s8, 5
    %p105 = pnand %p103, %p104
    %p106 = pneg %p105
    // Predicated region
    $region9: #{reid_forward.2} parent=5 // pred_check
      _
    $region10: #{reid_forward.2} parent=5 // pred_check_branch
      %108 = sbr.rel (%p105) target = $region12
    $region11: #{reid_forward.2} parent=5 // pred_region
      %s109 = ssub.s32 %s8, 1
      // Predicated region
      $region13: #{reid_forward.2} parent=11 // pred_check
        %p110 = pneg %p67
      $region14: #{reid_forward.2} parent=11 // pred_check_branch
        %112 = sbr.rel (%p110) target = $region16
      $region15: #{reid_forward.2} parent=11 // pred_region
        _
      $region16: #{reid_forward.2} parent=11 // pred_fallthru
        _
    $region12: #{reid_forward.2} parent=5 // pred_fallthru
      _
    %p113 = scmp.lt.s32.totalorder %s8, 4
    // Predicated region
    $region17: #{reid_forward.2} parent=5 // pred_check
      %p114 = pneg %p113
    $region18: #{reid_forward.2} parent=5 // pred_check_branch
      %116 = sbr.rel (%p114) target = $region20
    $region19: #{reid_forward.2} parent=5 // pred_region
      // Predicated region
      $region21: #{reid_forward.2} parent=19 // pred_check
        %p117 = pneg %p40
      $region22: #{reid_forward.2} parent=19 // pred_check_branch
        %119 = sbr.rel (%p117) target = $region24
      $region23: #{reid_forward.2} parent=19 // pred_region
        %p120 = scmp.lt.s32.totalorder %s15, 1
        %s121 = scalar_select %p120, %s15, 1
        %s122 = smul.addr %s121, 102
        %s123 = smul.addr %s122, 8
        %s124 = scalar_lea.vmem %s0, %s123
      $region24: #{reid_forward.2} parent=19 // pred_fallthru
        _
    $region20: #{reid_forward.2} parent=5 // pred_fallthru
      _
    %p125 = scmp.le.s32.totalorder 1, %s8
    %p126 = scmp.lt.s32.totalorder %s8, 5
    %p127 = pnand %p125, %p126
    %p128 = pneg %p127
    // Predicated region
    $region25: #{reid_forward.2} parent=5 // pred_check
      _
    $region26: #{reid_forward.2} parent=5 // pred_check_branch
      %130 = sbr.rel (%p127) target = $region28
    $region27: #{reid_forward.2} parent=5 // pred_region
      %s131 = ssub.s32 %s8, 1
      %p132 = scmp.lt.s32.totalorder %s17, 1
      %s133 = scalar_select %p132, %s17, 1
      %s134 = smul.addr %s133, 102
      %s135 = smul.addr %s134, 8
      %s136 = scalar_lea.vmem %s0, %s135
      %p137 = pneg %p46
      %p138 = pneg %p43
      %p139 = pneg %p67
      %p140 = pneg %p64
      %p141 = pneg %p95
      %p142 = pneg %p92
      %s143 = smul.u32 4, %s18
      %p144 = scmp.lt.s32.totalorder %s17, 1
      %s145 = scalar_select %p144, %s17, 1
      %p146 = scmp.lt.s32.totalorder %s143, 7
      %s147 = scalar_select %p146, %s143, 7
      %s148 = smul.addr %s145, 8
      %s149 = sadd.s32 %s147, %s148
      %s150 = smul.addr %s149, 8
      %s151 = scalar_lea.vmem %s2, %s150
      %p152 = scmp.lt.s32.totalorder %s17, 1
      %s153 = scalar_select %p152, %s17, 1
      %s154 = smul.addr %s153, 102
      %s155 = smul.addr %s154, 8
      %s156 = scalar_lea.vmem %s0, %s155
      %s157 = smul.u32 4, %s18
      %p158 = scmp.lt.s32.totalorder %s17, 1
      %s159 = scalar_select %p158, %s17, 1
      %p160 = scmp.lt.s32.totalorder %s157, 7
      %s161 = scalar_select %p160, %s157, 7
      %s162 = smul.addr %s159, 8
      %s163 = sadd.s32 %s161, %s162
      %s164 = smul.addr %s163, 8
      %s165 = scalar_lea.vmem %s2, %s164
      %s166 = smul.u32 4, %s18
      %s167 = smul.u32 %s18, 192
      %s168 = sshra.s32 %s167, 3
      %s169 = sand.u32 %s167, 7
      %s170 = smul.u32 %s168, 2
      %s171 = smul.addr %s170, 8
      %s172 = scalar_lea.vmem %s156, %s171
      %v173 = vld [vmem:[%s172] sm:$0xff]
      %v174 = vld [vmem:[%s172 + $0x8] sm:$0xff]
      %v175 = vld [vmem:[%s172 + $0x10] sm:$0xff]
      %v176 = vld [vmem:[%s172 + $0x18] sm:$0xff]
      %v177 = vld [vmem:[%s172 + $0x20] sm:$0xff]
      %v178 = vld [vmem:[%s172 + $0x28] sm:$0xff]
      %v179 = vld [vmem:[%s172 + $0x30] sm:$0xff]
      %v180 = vld [vmem:[%s172 + $0x38] sm:$0xff]
      %v181 = vld [vmem:[%s172 + $0x40] sm:$0xff]
      %v182 = vld [vmem:[%s172 + $0x48] sm:$0xff]
      %v183 = vld [vmem:[%s172 + $0x50] sm:$0xff]
      %v184 = vld [vmem:[%s172 + $0x58] sm:$0xff]
      %v185 = vld [vmem:[%s172 + $0x60] sm:$0xff]
      %v186 = vld [vmem:[%s172 + $0x68] sm:$0xff]
      %v187 = vld [vmem:[%s172 + $0x70] sm:$0xff]
      %v188 = vld [vmem:[%s172 + $0x78] sm:$0xff]
      %v189 = vld [vmem:[%s172 + $0x80] sm:$0xff]
      %v190 = vld [vmem:[%s172 + $0x88] sm:$0xff]
      %v191 = vld [vmem:[%s172 + $0x90] sm:$0xff]
      %v192 = vld [vmem:[%s172 + $0x98] sm:$0xff]
      %v193 = vld [vmem:[%s172 + $0xa0] sm:$0xff]
      %v194 = vld [vmem:[%s172 + $0xa8] sm:$0xff]
      %v195 = vld [vmem:[%s172 + $0xb0] sm:$0xff]
      %v196 = vld [vmem:[%s172 + $0xb8] sm:$0xff]
      %v197 = vld [vmem:[%s172 + $0xc0] sm:$0xff]
      %v198 = vld [vmem:[%s172 + $0xc8] sm:$0xff]
      %v199 = vld [vmem:[%s172 + $0xd0] sm:$0xff]
      %v200 = vld [vmem:[%s172 + $0xd8] sm:$0xff]
      %v201 = vld [vmem:[%s172 + $0xe0] sm:$0xff]
      %v202 = vld [vmem:[%s172 + $0xe8] sm:$0xff]
      %v203 = vld [vmem:[%s172 + $0xf0] sm:$0xff]
      %v204 = vld [vmem:[%s172 + $0xf8] sm:$0xff]
      %v205 = vld [vmem:[%s172 + $0x100] sm:$0xff]
      %v206 = vld [vmem:[%s172 + $0x108] sm:$0xff]
      %v207 = vld [vmem:[%s172 + $0x110] sm:$0xff]
      %v208 = vld [vmem:[%s172 + $0x118] sm:$0xff]
      %v209 = vld [vmem:[%s172 + $0x120] sm:$0xff]
      %v210 = vld [vmem:[%s172 + $0x128] sm:$0xff]
      %v211 = vld [vmem:[%s172 + $0x130] sm:$0xff]
      %v212 = vld [vmem:[%s172 + $0x138] sm:$0xff]
      %v213 = vld [vmem:[%s172 + $0x140] sm:$0xff]
      %v214 = vld [vmem:[%s172 + $0x148] sm:$0xff]
      %v215 = vld [vmem:[%s172 + $0x150] sm:$0xff]
      %v216 = vld [vmem:[%s172 + $0x158] sm:$0xff]
      %v217 = vld [vmem:[%s172 + $0x160] sm:$0xff]
      %v218 = vld [vmem:[%s172 + $0x168] sm:$0xff]
      %v219 = vld [vmem:[%s172 + $0x170] sm:$0xff]
      %v220 = vld [vmem:[%s172 + $0x178] sm:$0xff]
      %v221 = vld [vmem:[%s172 + $0x180] sm:$0xff]
      %v222 = vld [vmem:[%s172 + $0x188] sm:$0xff]
      %v223 = vld [vmem:[%s172 + $0x190] sm:$0xff]
      %v224 = vld [vmem:[%s172 + $0x198] sm:$0xff]
      %v225 = vld [vmem:[%s172 + $0x1a0] sm:$0xff]
      %v226 = vld [vmem:[%s172 + $0x1a8] sm:$0xff]
      %v227 = vld [vmem:[%s1] sm:$0xff]
      %v228 = vld [vmem:[%s1 + $0x8] sm:$0xff]
      %v229 = vld [vmem:[%s1 + $0x10] sm:$0xff]
      %v230 = vld [vmem:[%s1 + $0x18] sm:$0xff]
      %v231 = vld [vmem:[%s1 + $0x20] sm:$0xff]
      %v232 = vld [vmem:[%s1 + $0x28] sm:$0xff]
      %v233 = vld [vmem:[%s1 + $0x30] sm:$0xff]
      %v234 = vld [vmem:[%s1 + $0x38] sm:$0xff]
      %v235 = vld [vmem:[%s1 + $0x40] sm:$0xff]
      %v236 = vld [vmem:[%s1 + $0x48] sm:$0xff]
      %v237 = vld [vmem:[%s1 + $0x50] sm:$0xff]
      %v238 = vld [vmem:[%s1 + $0x58] sm:$0xff]
      %v239 = vld [vmem:[%s1 + $0x60] sm:$0xff]
      %v240 = vld [vmem:[%s1 + $0x68] sm:$0xff]
      %v241 = vld [vmem:[%s1 + $0x70] sm:$0xff]
      %v242 = vld [vmem:[%s1 + $0x78] sm:$0xff]
      %v243 = vld [vmem:[%s1 + $0x80] sm:$0xff]
      %v244 = vld [vmem:[%s1 + $0x88] sm:$0xff]
      %v245 = vld [vmem:[%s1 + $0x90] sm:$0xff]
      %v246 = vld [vmem:[%s1 + $0x98] sm:$0xff]
      %v247 = vld [vmem:[%s1 + $0xa0] sm:$0xff]
      %v248 = vld [vmem:[%s1 + $0xa8] sm:$0xff]
      %v249 = vld [vmem:[%s1 + $0xb0] sm:$0xff]
      %v250 = vld [vmem:[%s1 + $0xb8] sm:$0xff]
      %v251 = vld [vmem:[%s1 + $0xc0] sm:$0xff]
      %v252 = vld [vmem:[%s1 + $0xc8] sm:$0xff]
      %v253 = vld [vmem:[%s1 + $0xd0] sm:$0xff]
      %v254 = vld [vmem:[%s1 + $0xd8] sm:$0xff]
      %v255 = vld [vmem:[%s1 + $0xe0] sm:$0xff]
      %v256 = vld [vmem:[%s1 + $0xe8] sm:$0xff]
      %v257 = vld [vmem:[%s1 + $0xf0] sm:$0xff]
      %v258 = vld [vmem:[%s1 + $0xf8] sm:$0xff]
      %259 = vmatprep.subr.mxu0 0.0
      %260 = vmatpush1.msra.mxu0 %v242
      %261 = vmatprep.subr.mxu0 0.0
      %262 = vmatpush1.msra.mxu0 %v241
      %263 = vmatprep.subr.mxu0 0.0
      %264 = vmatpush1.msra.mxu0 %v240
      %265 = vmatprep.subr.mxu0 0.0
      %266 = vmatpush1.msra.mxu0 %v239
      %267 = vmatprep.subr.mxu0 0.0
      %268 = vmatpush1.msra.mxu0 %v238
      %269 = vmatprep.subr.mxu0 0.0
      %270 = vmatpush1.msra.mxu0 %v237
      %271 = vmatprep.subr.mxu0 0.0
      %272 = vmatpush1.msra.mxu0 %v236
      %273 = vmatprep.subr.mxu0 0.0
      %274 = vmatpush1.msra.mxu0 %v235
      %275 = vmatprep.subr.mxu0 0.0
      %276 = vmatpush1.msra.mxu0 %v234
      %277 = vmatprep.subr.mxu0 0.0
      %278 = vmatpush1.msra.mxu0 %v233
      %279 = vmatprep.subr.mxu0 0.0
      %280 = vmatpush1.msra.mxu0 %v232
      %281 = vmatprep.subr.mxu0 0.0
      %282 = vmatpush1.msra.mxu0 %v231
      %283 = vmatprep.subr.mxu0 0.0
      %284 = vmatpush1.msra.mxu0 %v230
      %285 = vmatprep.subr.mxu0 0.0
      %286 = vmatpush1.msra.mxu0 %v229
      %287 = vmatprep.subr.mxu0 0.0
      %288 = vmatpush1.msra.mxu0 %v228
      %289 = vmatprep.subr.mxu0 0.0
      %290 = vmatpush1.msra.mxu0 %v227
      %291 = vmatprep.subr.mxu0 0.0
      %292 = vmatpush2.msra.mxu0 %v258
      %293 = vmatprep.subr.mxu0 0.0
      %294 = vmatpush2.msra.mxu0 %v257
      %295 = vmatprep.subr.mxu0 0.0
      %296 = vmatpush2.msra.mxu0 %v256
      %297 = vmatprep.subr.mxu0 0.0
      %298 = vmatpush2.msra.mxu0 %v255
      %299 = vmatprep.subr.mxu0 0.0
      %300 = vmatpush2.msra.mxu0 %v254
      %301 = vmatprep.subr.mxu0 0.0
      %302 = vmatpush2.msra.mxu0 %v253
      %303 = vmatprep.subr.mxu0 0.0
      %304 = vmatpush2.msra.mxu0 %v252
      %305 = vmatprep.subr.mxu0 0.0
      %306 = vmatpush2.msra.mxu0 %v251
      %307 = vmatprep.subr.mxu0 0.0
      %308 = vmatpush2.msra.mxu0 %v250
      %309 = vmatprep.subr.mxu0 0.0
      %310 = vmatpush2.msra.mxu0 %v249
      %311 = vmatprep.subr.mxu0 0.0
      %312 = vmatpush2.msra.mxu0 %v248
      %313 = vmatprep.subr.mxu0 0.0
      %314 = vmatpush2.msra.mxu0 %v247
      %315 = vmatprep.subr.mxu0 0.0
      %316 = vmatpush2.msra.mxu0 %v246
      %317 = vmatprep.subr.mxu0 0.0
      %318 = vmatpush2.msra.mxu0 %v245
      %319 = vmatprep.subr.mxu0 0.0
      %320 = vmatpush2.msra.mxu0 %v244
      %321 = vmatprep.subr.mxu0 0.0
      %322 = vmatpush2.msra.mxu0 %v243
      %323 = vmatprep.mubr.f32.mxu0 %v174
      %324 = vmatmul.mubr.f32.gmra.mxu0 %v173
      %v325 = vpop.f32.mrf.mxu0
      %v326 = vadd.f32 0.0, %v325
      %v327 = vpop.f32.mrf.mxu0
      %328 = vmatprep.mubr.f32.mxu0 %v176
      %329 = vmatmul.mubr.f32.gmra.mxu0 %v175
      %v330 = vpop.f32.mrf.mxu0
      %v331 = vadd.f32 0.0, %v330
      %v332 = vpop.f32.mrf.mxu0
      %333 = vmatprep.mubr.f32.mxu0 %v178
      %334 = vmatmul.mubr.f32.gmra.mxu0 %v177
      %v335 = vpop.f32.mrf.mxu0
      %v336 = vadd.f32 0.0, %v335
      %v337 = vpop.f32.mrf.mxu0
      %338 = vmatprep.mubr.f32.mxu0 %v180
      %339 = vmatmul.mubr.f32.gmra.mxu0 %v179
      %v340 = vpop.f32.mrf.mxu0
      %v341 = vadd.f32 0.0, %v340
      %v342 = vpop.f32.mrf.mxu0
      %343 = vmatprep.mubr.f32.mxu0 %v182
      %344 = vmatmul.mubr.f32.gmra.mxu0 %v181
      %v345 = vpop.f32.mrf.mxu0
      %v346 = vadd.f32 0.0, %v345
      %v347 = vpop.f32.mrf.mxu0
      %348 = vmatprep.mubr.f32.mxu0 %v184
      %349 = vmatmul.mubr.f32.gmra.mxu0 %v183
      %v350 = vpop.f32.mrf.mxu0
      %v351 = vadd.f32 0.0, %v350
      %v352 = vpop.f32.mrf.mxu0
      %353 = vmatprep.mubr.f32.mxu0 %v186
      %354 = vmatmul.mubr.f32.gmra.mxu0 %v185
      %v355 = vpop.f32.mrf.mxu0
      %v356 = vadd.f32 0.0, %v355
      %v357 = vpop.f32.mrf.mxu0
      %358 = vmatprep.mubr.f32.mxu0 %v188
      %359 = vmatmul.mubr.f32.gmra.mxu0 %v187
      %v360 = vpop.f32.mrf.mxu0
      %v361 = vadd.f32 0.0, %v360
      %v362 = vpop.f32.mrf.mxu0
      %363 = vmatprep.mubr.f32.mxu0 %v190
      %364 = vmatmul.mubr.f32.gmra.mxu0 %v189
      %v365 = vpop.f32.mrf.mxu0
      %v366 = vadd.f32 0.0, %v365
      %v367 = vpop.f32.mrf.mxu0
      %368 = vmatprep.mubr.f32.mxu0 %v192
      %369 = vmatmul.mubr.f32.gmra.mxu0 %v191
      %v370 = vpop.f32.mrf.mxu0
      %v371 = vadd.f32 0.0, %v370
      %v372 = vpop.f32.mrf.mxu0
      %373 = vmatprep.mubr.f32.mxu0 %v194
      %374 = vmatmul.mubr.f32.gmra.mxu0 %v193
      %v375 = vpop.f32.mrf.mxu0
      %v376 = vadd.f32 0.0, %v375
      %v377 = vpop.f32.mrf.mxu0
      %378 = vmatprep.mubr.f32.mxu0 %v196
      %379 = vmatmul.mubr.f32.gmra.mxu0 %v195
      %v380 = vpop.f32.mrf.mxu0
      %v381 = vadd.f32 0.0, %v380
      %v382 = vpop.f32.mrf.mxu0
      %383 = vmatprep.mubr.f32.mxu0 %v198
      %384 = vmatmul.mubr.f32.gmra.mxu0 %v197
      %v385 = vpop.f32.mrf.mxu0
      %v386 = vadd.f32 0.0, %v385
      %v387 = vpop.f32.mrf.mxu0
      %388 = vmatprep.mubr.f32.mxu0 %v200
      %389 = vmatmul.mubr.f32.gmra.mxu0 %v199
      %v390 = vpop.f32.mrf.mxu0
      %v391 = vadd.f32 0.0, %v390
      %v392 = vpop.f32.mrf.mxu0
      %393 = vmatprep.mubr.f32.mxu0 %v202
      %394 = vmatmul.mubr.f32.gmra.mxu0 %v201
      %v395 = vpop.f32.mrf.mxu0
      %v396 = vadd.f32 0.0, %v395
      %v397 = vpop.f32.mrf.mxu0
      %398 = vmatprep.mubr.f32.mxu0 %v204
      %399 = vmatmul.mubr.f32.gmra.mxu0 %v203
      %v400 = vpop.f32.mrf.mxu0
      %v401 = vadd.f32 0.0, %v400
      %v402 = vpop.f32.mrf.mxu0
      %403 = vmatprep.mubr.f32.mxu0 %v206
      %404 = vmatmul.mubr.f32.gmra.mxu0 %v205
      %v405 = vpop.f32.mrf.mxu0
      %v406 = vadd.f32 0.0, %v405
      %v407 = vpop.f32.mrf.mxu0
      %408 = vmatprep.mubr.f32.mxu0 %v208
      %409 = vmatmul.mubr.f32.gmra.mxu0 %v207
      %v410 = vpop.f32.mrf.mxu0
      %v411 = vadd.f32 0.0, %v410
      %v412 = vpop.f32.mrf.mxu0
      %413 = vmatprep.mubr.f32.mxu0 %v210
      %414 = vmatmul.mubr.f32.gmra.mxu0 %v209
      %v415 = vpop.f32.mrf.mxu0
      %v416 = vadd.f32 0.0, %v415
      %v417 = vpop.f32.mrf.mxu0
      %418 = vmatprep.mubr.f32.mxu0 %v212
      %419 = vmatmul.mubr.f32.gmra.mxu0 %v211
      %v420 = vpop.f32.mrf.mxu0
      %v421 = vadd.f32 0.0, %v420
      %v422 = vpop.f32.mrf.mxu0
      %423 = vmatprep.mubr.f32.mxu0 %v214
      %424 = vmatmul.mubr.f32.gmra.mxu0 %v213
      %v425 = vpop.f32.mrf.mxu0
      %v426 = vadd.f32 0.0, %v425
      %v427 = vpop.f32.mrf.mxu0
      %428 = vmatprep.mubr.f32.mxu0 %v216
      %429 = vmatmul.mubr.f32.gmra.mxu0 %v215
      %v430 = vpop.f32.mrf.mxu0
      %v431 = vadd.f32 0.0, %v430
      %v432 = vpop.f32.mrf.mxu0
      %433 = vmatprep.mubr.f32.mxu0 %v218
      %434 = vmatmul.mubr.f32.gmra.mxu0 %v217
      %v435 = vpop.f32.mrf.mxu0
      %v436 = vadd.f32 0.0, %v435
      %v437 = vpop.f32.mrf.mxu0
      %438 = vmatprep.mubr.f32.mxu0 %v220
      %439 = vmatmul.mubr.f32.gmra.mxu0 %v219
      %v440 = vpop.f32.mrf.mxu0
      %v441 = vadd.f32 0.0, %v440
      %v442 = vpop.f32.mrf.mxu0
      %443 = vmatprep.mubr.f32.mxu0 %v222
      %444 = vmatmul.mubr.f32.gmra.mxu0 %v221
      %v445 = vpop.f32.mrf.mxu0
      %v446 = vadd.f32 0.0, %v445
      %v447 = vpop.f32.mrf.mxu0
      %448 = vmatprep.mubr.f32.mxu0 %v224
      %449 = vmatmul.mubr.f32.gmra.mxu0 %v223
      %v450 = vpop.f32.mrf.mxu0
      %v451 = vadd.f32 0.0, %v450
      %v452 = vpop.f32.mrf.mxu0
      %453 = vmatprep.mubr.f32.mxu0 %v226
      %454 = vmatmul.mubr.f32.gmra.mxu0 %v225
      %v455 = vpop.f32.mrf.mxu0
      %v456 = vadd.f32 0.0, %v455
      %v457 = vpop.f32.mrf.mxu0
      %458 = vdwg.mxu0
      %v459 = vmax.f32 %v326, 0.0
      %v460 = vmax.f32 %v331, 0.0
      %v461 = vmax.f32 %v336, 0.0
      %v462 = vmax.f32 %v341, 0.0
      %v463 = vmax.f32 %v346, 0.0
      %v464 = vmax.f32 %v351, 0.0
      %v465 = vmax.f32 %v356, 0.0
      %v466 = vmax.f32 %v361, 0.0
      %v467 = vmax.f32 %v366, 0.0
      %v468 = vmax.f32 %v371, 0.0
      %v469 = vmax.f32 %v376, 0.0
      %v470 = vmax.f32 %v381, 0.0
      %v471 = vmax.f32 %v386, 0.0
      %v472 = vmax.f32 %v391, 0.0
      %v473 = vmax.f32 %v396, 0.0
      %v474 = vmax.f32 %v401, 0.0
      %v475 = vmax.f32 %v406, 0.0
      %v476 = vmax.f32 %v411, 0.0
      %v477 = vmax.f32 %v416, 0.0
      %v478 = vmax.f32 %v421, 0.0
      %v479 = vmax.f32 %v426, 0.0
      %v480 = vmax.f32 %v431, 0.0
      %v481 = vmax.f32 %v436, 0.0
      %v482 = vmax.f32 %v441, 0.0
      %v483 = vmax.f32 %v446, 0.0
      %v484 = vmax.f32 %v451, 0.0
      %v485 = vmax.f32 %v456, 0.0
      %486 = vst [vmem:[#allocation2] sm:$0xff] %v459
      %487 = vst [vmem:[#allocation2 + $0x8] sm:$0xff] %v460
      %488 = vst [vmem:[#allocation2 + $0x10] sm:$0xff] %v461
      %489 = vst [vmem:[#allocation2 + $0x18] sm:$0xff] %v462
      %490 = vst [vmem:[#allocation2 + $0x20] sm:$0xff] %v463
      %491 = vst [vmem:[#allocation2 + $0x28] sm:$0xff] %v464
      %492 = vst [vmem:[#allocation2 + $0x30] sm:$0xff] %v465
      %493 = vst [vmem:[#allocation2 + $0x38] sm:$0xff] %v466
      %494 = vst [vmem:[#allocation2 + $0x40] sm:$0xff] %v467
      %495 = vst [vmem:[#allocation2 + $0x48] sm:$0xff] %v468
      %496 = vst [vmem:[#allocation2 + $0x50] sm:$0xff] %v469
      %497 = vst [vmem:[#allocation2 + $0x58] sm:$0xff] %v470
      %498 = vst [vmem:[#allocation2 + $0x60] sm:$0xff] %v471
      %499 = vst [vmem:[#allocation2 + $0x68] sm:$0xff] %v472
      %500 = vst [vmem:[#allocation2 + $0x70] sm:$0xff] %v473
      %501 = vst [vmem:[#allocation2 + $0x78] sm:$0xff] %v474
      %502 = vst [vmem:[#allocation2 + $0x80] sm:$0xff] %v475
      %503 = vst [vmem:[#allocation2 + $0x88] sm:$0xff] %v476
      %504 = vst [vmem:[#allocation2 + $0x90] sm:$0xff] %v477
      %505 = vst [vmem:[#allocation2 + $0x98] sm:$0xff] %v478
      %506 = vst [vmem:[#allocation2 + $0xa0] sm:$0xff] %v479
      %507 = vst [vmem:[#allocation2 + $0xa8] sm:$0xff] %v480
      %508 = vst [vmem:[#allocation2 + $0xb0] sm:$0xff] %v481
      %509 = vst [vmem:[#allocation2 + $0xb8] sm:$0xff] %v482
      %510 = vst [vmem:[#allocation2 + $0xc0] sm:$0xff] %v483
      %511 = vst [vmem:[#allocation2 + $0xc8] sm:$0xff] %v484
      %512 = vst [vmem:[#allocation2 + $0xd0] sm:$0xff] %v485
      %v513 = vld [vmem:[#allocation2] ss:$2 sm:$0xff]
      %s514 = scalar_lea.vmem [#allocation2], 1
      %v515 = vld [vmem:[%s514] ss:$2 sm:$0xff]
      %v516 = vmax.f32 %v513, %v515
      %s517 = scalar_lea.vmem [#allocation2], 2
      %v518 = vld [vmem:[%s517] ss:$2 sm:$0xff]
      %v519 = vmax.f32 %v516, %v518
      %s520 = scalar_lea.vmem [#allocation2], 24
      %v521 = vld [vmem:[%s520] ss:$2 sm:$0xff]
      %v522 = vmax.f32 %v519, %v521
      %s523 = scalar_lea.vmem [#allocation2], 25
      %v524 = vld [vmem:[%s523] ss:$2 sm:$0xff]
      %v525 = vmax.f32 %v522, %v524
      %s526 = scalar_lea.vmem [#allocation2], 26
      %v527 = vld [vmem:[%s526] ss:$2 sm:$0xff]
      %v528 = vmax.f32 %v525, %v527
      %s529 = scalar_lea.vmem [#allocation2], 48
      %v530 = vld [vmem:[%s529] ss:$2 sm:$0xff]
      %v531 = vmax.f32 %v528, %v530
      %s532 = scalar_lea.vmem [#allocation2], 49
      %v533 = vld [vmem:[%s532] ss:$2 sm:$0xff]
      %v534 = vmax.f32 %v531, %v533
      %s535 = scalar_lea.vmem [#allocation2], 50
      %v536 = vld [vmem:[%s535] ss:$2 sm:$0xff]
      %v537 = vmax.f32 %v534, %v536
      %538 = vst [vmem:[%s165] sm:$0xff] %v537
      %v539 = vld [vmem:[%s529] ss:$2 sm:$0xff]
      %v540 = vld [vmem:[%s532] ss:$2 sm:$0xff]
      %v541 = vmax.f32 %v539, %v540
      %v542 = vld [vmem:[%s535] ss:$2 sm:$0xff]
      %v543 = vmax.f32 %v541, %v542
      %s544 = scalar_lea.vmem [#allocation2], 72
      %v545 = vld [vmem:[%s544] ss:$2 sm:$0xff]
      %v546 = vmax.f32 %v543, %v545
      %s547 = scalar_lea.vmem [#allocation2], 73
      %v548 = vld [vmem:[%s547] ss:$2 sm:$0xff]
      %v549 = vmax.f32 %v546, %v548
      %s550 = scalar_lea.vmem [#allocation2], 74
      %v551 = vld [vmem:[%s550] ss:$2 sm:$0xff]
      %v552 = vmax.f32 %v549, %v551
      %s553 = scalar_lea.vmem [#allocation2], 96
      %v554 = vld [vmem:[%s553] ss:$2 sm:$0xff]
      %v555 = vmax.f32 %v552, %v554
      %s556 = scalar_lea.vmem [#allocation2], 97
      %v557 = vld [vmem:[%s556] ss:$2 sm:$0xff]
      %v558 = vmax.f32 %v555, %v557
      %s559 = scalar_lea.vmem [#allocation2], 98
      %v560 = vld [vmem:[%s559] ss:$2 sm:$0xff]
      %v561 = vmax.f32 %v558, %v560
      %s562 = scalar_lea.vmem %s165, 8
      %563 = vst [vmem:[%s562] sm:$0xff] %v561
      %v564 = vld [vmem:[%s553] ss:$2 sm:$0xff]
      %v565 = vld [vmem:[%s556] ss:$2 sm:$0xff]
      %v566 = vmax.f32 %v564, %v565
      %v567 = vld [vmem:[%s559] ss:$2 sm:$0xff]
      %v568 = vmax.f32 %v566, %v567
      %s569 = scalar_lea.vmem [#allocation2], 120
      %v570 = vld [vmem:[%s569] ss:$2 sm:$0xff]
      %v571 = vmax.f32 %v568, %v570
      %s572 = scalar_lea.vmem [#allocation2], 121
      %v573 = vld [vmem:[%s572] ss:$2 sm:$0xff]
      %v574 = vmax.f32 %v571, %v573
      %s575 = scalar_lea.vmem [#allocation2], 122
      %v576 = vld [vmem:[%s575] ss:$2 sm:$0xff]
      %v577 = vmax.f32 %v574, %v576
      %s578 = scalar_lea.vmem [#allocation2], 144
      %v579 = vld [vmem:[%s578] ss:$2 sm:$0xff]
      %v580 = vmax.f32 %v577, %v579
      %s581 = scalar_lea.vmem [#allocation2], 145
      %v582 = vld [vmem:[%s581] ss:$2 sm:$0xff]
      %v583 = vmax.f32 %v580, %v582
      %s584 = scalar_lea.vmem [#allocation2], 146
      %v585 = vld [vmem:[%s584] ss:$2 sm:$0xff]
      %v586 = vmax.f32 %v583, %v585
      %s587 = scalar_lea.vmem %s165, 16
      %588 = vst [vmem:[%s587] sm:$0xff] %v586
      %v589 = vld [vmem:[%s578] ss:$2 sm:$0xff]
      %v590 = vld [vmem:[%s581] ss:$2 sm:$0xff]
      %v591 = vmax.f32 %v589, %v590
      %v592 = vld [vmem:[%s584] ss:$2 sm:$0xff]
      %v593 = vmax.f32 %v591, %v592
      %s594 = scalar_lea.vmem [#allocation2], 168
      %v595 = vld [vmem:[%s594] ss:$2 sm:$0xff]
      %v596 = vmax.f32 %v593, %v595
      %s597 = scalar_lea.vmem [#allocation2], 169
      %v598 = vld [vmem:[%s597] ss:$2 sm:$0xff]
      %v599 = vmax.f32 %v596, %v598
      %s600 = scalar_lea.vmem [#allocation2], 170
      %v601 = vld [vmem:[%s600] ss:$2 sm:$0xff]
      %v602 = vmax.f32 %v599, %v601
      %s603 = scalar_lea.vmem [#allocation2], 192
      %v604 = vld [vmem:[%s603] ss:$2 sm:$0xff]
      %v605 = vmax.f32 %v602, %v604
      %s606 = scalar_lea.vmem [#allocation2], 193
      %v607 = vld [vmem:[%s606] ss:$2 sm:$0xff]
      %v608 = vmax.f32 %v605, %v607
      %s609 = scalar_lea.vmem [#allocation2], 194
      %v610 = vld [vmem:[%s609] ss:$2 sm:$0xff]
      %v611 = vmax.f32 %v608, %v610
      %s612 = scalar_lea.vmem %s165, 24
      %613 = vst [vmem:[%s612] sm:$0xff] %v611
      %s614 = smul.u32 4, %s18
      %p615 = scmp.lt.s32.totalorder %s17, 1
      %s616 = scalar_select %p615, %s17, 1
      %p617 = scmp.lt.s32.totalorder %s614, 7
      %s618 = scalar_select %p617, %s614, 7
      %s619 = smul.addr %s616, 8
      %s620 = sadd.s32 %s618, %s619
      %s621 = smul.addr %s620, 8
      %s622 = scalar_lea.vmem %s2, %s621
      // Predicated region
      $region29: #{reid_forward.2} parent=27 // pred_check
        %p623 = pneg %p92
      $region30: #{reid_forward.2} parent=27 // pred_check_branch
        %625 = sbr.rel (%p623) target = $region32
      $region31: #{reid_forward.2} parent=27 // pred_region
        %s626 = smul.u32 4, %s18
      $region32: #{reid_forward.2} parent=27 // pred_fallthru
        _
    $region28: #{reid_forward.2} parent=5 // pred_fallthru
      _
    %p627 = scmp.le.s32.totalorder 2, %s8
    // Predicated region
    $region33: #{reid_forward.2} parent=5 // pred_check
      %p628 = pneg %p627
    $region34: #{reid_forward.2} parent=5 // pred_check_branch
      %630 = sbr.rel (%p628) target = $region36
    $region35: #{reid_forward.2} parent=5 // pred_region
      %s631 = ssub.s32 %s8, 2
      // Predicated region
      $region37: #{reid_forward.2} parent=35 // pred_check
        %p632 = pneg %p98
      $region38: #{reid_forward.2} parent=35 // pred_check_branch
        %634 = sbr.rel (%p632) target = $region40
      $region39: #{reid_forward.2} parent=35 // pred_region
        %s635 = smul.u32 4, %s20
        %p636 = scmp.lt.s32.totalorder %s19, 1
        %s637 = scalar_select %p636, %s19, 1
        %p638 = scmp.lt.s32.totalorder %s635, 7
        %s639 = scalar_select %p638, %s635, 7
        %s640 = smul.addr %s637, 8
        %s641 = sadd.s32 %s639, %s640
        %s642 = smul.addr %s641, 8
        %s643 = scalar_lea.vmem %s2, %s642
      $region40: #{reid_forward.2} parent=35 // pred_fallthru
        _
    $region36: #{reid_forward.2} parent=5 // pred_fallthru
      _
  $region6: #{reid_forward.2} parent=0 // loop_footer
    %s12 = sadd.s32 1, %s8
  $region7: #{reid_forward.2} parent=0 // loop_footer_branch
    %7 = sbr.rel target = $region3
  $region8: #{reid_forward.2} parent=0 // loop_exit
    _

</llo_original>
